<compile_context>
chip_gen: v7x
topology: tpu7x:2x2x1
jax: 0.10.0
libtpu: 0.0.40
codegen_flags: <defaults>
</compile_context>

<pallas_src>
import math

import jax
import jax.numpy as jnp
from jax import lax
from jax.experimental import pallas as pl
from jax.experimental.pallas import tpu as pltpu


def lstm_gen_kernel(x_ref, w_ih_ref, w_hh_ref, b_ref, w_out_ref, b_out_ref,
                    out_ref, xg_ref, hs_ref):
    """Single-invocation kernel: whole (small) problem resident in VMEM.

    x_ref   : (seq_len, in_dim)
    xg_ref  : (seq_len, 4*Hp)  scratch -- precomputed input projections
    hs_ref  : (seq_len, Hp)    scratch -- hidden states per timestep
    out_ref : (seq_len, Op)
    """
    seq_len = x_ref.shape[0]
    hp = w_hh_ref.shape[0]  # padded hidden size (multiple of 128)

    # Batched input->gates projection for all timesteps at once (one MXU pass).
    xg_ref[...] = (
        jnp.dot(x_ref[...], w_ih_ref[...], preferred_element_type=jnp.float32)
        + b_ref[...]
    )

    def step(t, carry):
        h, c = carry  # each (1, Hp)
        gates = xg_ref[pl.ds(t, 1), :] + jnp.dot(
            h, w_hh_ref[...], preferred_element_type=jnp.float32)
        # Gate layout is [i | f | o | g], each Hp lanes wide, so every slice
        # below starts on a 128-lane boundary (no XLU lane rotates) and only
        # 3 transcendental calls sit on the per-step dependence chain.
        sg = jax.nn.sigmoid(gates[:, 0:3 * hp])       # i, f, o in one EUP slab
        g = jnp.tanh(gates[:, 3 * hp:4 * hp])
        i = sg[:, 0 * hp:1 * hp]
        f = sg[:, 1 * hp:2 * hp]
        o = sg[:, 2 * hp:3 * hp]
        c_new = f * c + i * g
        h_new = o * jnp.tanh(c_new)
        hs_ref[pl.ds(t, 1), :] = h_new
        return h_new, c_new

    h0 = jnp.zeros((1, hp), jnp.float32)
    c0 = jnp.zeros((1, hp), jnp.float32)
    # seq_len is a trace-time constant: fully unroll the serial recurrence.
    lax.fori_loop(0, seq_len, step, (h0, c0), unroll=True)

    # Linear + Tanh head over all timesteps (one MXU pass, lane-dense store).
    out_ref[...] = jnp.tanh(
        jnp.dot(hs_ref[...], w_out_ref[...], preferred_element_type=jnp.float32)
        + b_out_ref[...])


def _round_up(n, m):
    return ((n + m - 1) // m) * m


def lstm_generator_forward(x, params):
    """x: (batch=1, seq_len, in_dim) float32 -> (batch, seq_len, out_dim)."""
    batch, seq_len, in_dim = x.shape
    assert batch == 1, "PyTorch reference forward only supports batch_size==1"
    hidden = params["w_hh"].shape[0]
    out_dim = params["w_out"].shape[1]

    hp = _round_up(hidden, 128)   # lane-aligned hidden
    op = _round_up(out_dim, 128)  # lane-dense output

    # --- repack logical params (gate order i,f,g,o) into the kernel layout ---
    def split_gates(w):
        return [w[..., k * hidden:(k + 1) * hidden] for k in range(4)]

    def pad_last(a, new):
        pad = [(0, 0)] * (a.ndim - 1) + [(0, new - a.shape[-1])]
        return jnp.pad(a, pad)

    wi, wf, wg, wo = split_gates(params["w_ih"])
    w_ih_p = jnp.concatenate([pad_last(w, hp) for w in (wi, wf, wo, wg)], axis=-1)

    hi, hf, hg, ho = split_gates(params["w_hh"])
    w_hh_p = jnp.concatenate([pad_last(w, hp) for w in (hi, hf, ho, hg)], axis=-1)
    w_hh_p = jnp.pad(w_hh_p, ((0, hp - hidden), (0, 0)))  # pad contraction rows

    bi, bf, bg, bo = split_gates(params["b"])
    b_p = jnp.concatenate([pad_last(b, hp) for b in (bi, bf, bo, bg)], axis=-1)

    w_out_p = jnp.pad(params["w_out"], ((0, hp - hidden), (0, op - out_dim)))
    b_out_p = pad_last(params["b_out"], op)

    x2 = x.reshape(seq_len, in_dim)

    out = pl.pallas_call(
        lstm_gen_kernel,
        out_shape=jax.ShapeDtypeStruct((seq_len, op), jnp.float32),
        in_specs=[pl.BlockSpec(memory_space=pltpu.MemorySpace.VMEM)] * 6,
        out_specs=pl.BlockSpec(memory_space=pltpu.MemorySpace.VMEM),
        scratch_shapes=[
            pltpu.VMEM((seq_len, 4 * hp), jnp.float32),  # xg
            pltpu.VMEM((seq_len, hp), jnp.float32),      # hs
        ],
    )(x2, w_ih_p, w_hh_p, b_p, w_out_p, b_out_p)

    return out[:, :out_dim].reshape(batch, seq_len, out_dim)


def make_params(key, in_dim, out_dim, hidden_dim):
    """Deterministic synthetic parameters (PyTorch-style uniform init).

    Logical layout (pre-transposed, PyTorch gate order i,f,g,o):
      w_ih: (in_dim, 4*hidden), w_hh: (hidden, 4*hidden), b: (1, 4*hidden),
      w_out: (hidden, out_dim), b_out: (1, out_dim).
    """
    ks = jax.random.split(key, 6)
    s = 1.0 / math.sqrt(hidden_dim)
    u = lambda k, shape: jax.random.uniform(k, shape, jnp.float32, -s, s)
    b_ih = u(ks[2], (4 * hidden_dim,))
    b_hh = u(ks[3], (4 * hidden_dim,))
    return {
        "w_ih": u(ks[0], (in_dim, 4 * hidden_dim)),
        "w_hh": u(ks[1], (hidden_dim, 4 * hidden_dim)),
        "b": (b_ih + b_hh).reshape(1, 4 * hidden_dim),
        "w_out": u(ks[4], (hidden_dim, out_dim)),
        "b_out": u(ks[5], (out_dim,)).reshape(1, out_dim),
    }


def reference_forward(x, params):
    """Pure-JAX reference matching PyTorch nn.LSTM + Linear + Tanh semantics."""
    batch, seq_len, in_dim = x.shape
    hidden = params["w_hh"].shape[0]
    x2 = x.reshape(seq_len, in_dim)
    xg = x2 @ params["w_ih"] + params["b"][0]

    def step(carry, g_in):
        h, c = carry
        gates = g_in + h @ params["w_hh"]
        i = jax.nn.sigmoid(gates[0 * hidden:1 * hidden])
        f = jax.nn.sigmoid(gates[1 * hidden:2 * hidden])
        g = jnp.tanh(gates[2 * hidden:3 * hidden])
        o = jax.nn.sigmoid(gates[3 * hidden:4 * hidden])
        c_new = f * c + i * g
        h_new = o * jnp.tanh(c_new)
        return (h_new, c_new), h_new

    init = (jnp.zeros((hidden,), jnp.float32), jnp.zeros((hidden,), jnp.float32))
    _, hs = lax.scan(step, init, xg)
    out = jnp.tanh(hs @ params["w_out"] + params["b_out"][0])
    return out.reshape(batch, seq_len, -1)


if __name__ == "__main__":
    in_dim, out_dim, hidden_dim = 4, 4, 32
    batch, seq_len = 1, 8

    key = jax.random.PRNGKey(0)
    pkey, xkey = jax.random.split(key)
    params = make_params(pkey, in_dim, out_dim, hidden_dim)
    x = jax.random.normal(xkey, (batch, seq_len, in_dim), jnp.float32)

    out = lstm_generator_forward(x, params)
    out = jax.block_until_ready(out)

    ref = reference_forward(x, params)
    assert out.shape == (batch, seq_len, out_dim)
    assert jnp.allclose(out, ref, atol=1e-5, rtol=1e-5), "mismatch vs JAX reference"

    print("KERNEL_OK")
</pallas_src>

<mosaic_0001>
module attributes {stable_mosaic.version = 11 : i64} {
  func.func @lstm_gen_kernel(%arg0: memref<8x4xf32, #tpu.memory_space<vmem>>, %arg1: memref<4x512xf32, #tpu.memory_space<vmem>>, %arg2: memref<128x512xf32, #tpu.memory_space<vmem>>, %arg3: memref<1x512xf32, #tpu.memory_space<vmem>>, %arg4: memref<128x128xf32, #tpu.memory_space<vmem>>, %arg5: memref<1x128xf32, #tpu.memory_space<vmem>>, %arg6: memref<8x128xf32, #tpu.memory_space<vmem>>, %arg7: memref<8x512xf32, #tpu.memory_space<vmem>>, %arg8: memref<8x128xf32, #tpu.memory_space<vmem>>) attributes {dimension_semantics = [], scalar_prefetch = 0 : i64, scratch_operands = 2 : i64, tpu.core_type = #tpu.core_type<tc>} {
    %c0 = arith.constant 0 : index
    %c0_0 = arith.constant 0 : index
    %0 = vector.load %arg0[%c0, %c0_0] : memref<8x4xf32, #tpu.memory_space<vmem>>, vector<8x4xf32>
    %c0_1 = arith.constant 0 : index
    %c0_2 = arith.constant 0 : index
    %1 = vector.load %arg1[%c0_1, %c0_2] : memref<4x512xf32, #tpu.memory_space<vmem>>, vector<4x512xf32>
    %cst = arith.constant dense<0.000000e+00> : vector<8x512xf32>
    %2 = tpu.matmul %0, %1, %cst {dimension_numbers = #tpu.dot_dimension_numbers<[1], [0], [0], [1], [0, 0, 1, 1], [], []>} : vector<8x4xf32>, vector<4x512xf32>, vector<8x512xf32> -> vector<8x512xf32>
    %c0_3 = arith.constant 0 : index
    %c0_4 = arith.constant 0 : index
    %3 = vector.load %arg3[%c0_3, %c0_4] : memref<1x512xf32, #tpu.memory_space<vmem>>, vector<1x512xf32>
    %4 = vector.broadcast %3 : vector<1x512xf32> to vector<8x512xf32>
    %5 = arith.addf %2, %4 : vector<8x512xf32>
    %c0_5 = arith.constant 0 : index
    %c0_6 = arith.constant 0 : index
    %6 = vector.load %arg7[%c0_5, %c0_6] : memref<8x512xf32, #tpu.memory_space<vmem>>, vector<8x512xf32>
    tpu.vector_store %arg7[%c0_5, %c0_6], %5 {strides = array<i32>} : memref<8x512xf32, #tpu.memory_space<vmem>>, vector<8x512xf32>,
    %cst_7 = arith.constant 0.000000e+00 : f32
    %7 = vector.broadcast %cst_7 : f32 to vector<1x128xf32>
    %cst_8 = arith.constant 0.000000e+00 : f32
    %8 = vector.broadcast %cst_8 : f32 to vector<1x128xf32>
    %c0_i32 = arith.constant 0 : i32
    %9 = arith.index_cast %c0_i32 : i32 to index
    %c0_9 = arith.constant 0 : index
    %10 = vector.load %arg7[%9, %c0_9] : memref<8x512xf32, #tpu.memory_space<vmem>>, vector<1x512xf32>
    %c0_10 = arith.constant 0 : index
    %c0_11 = arith.constant 0 : index
    %11 = vector.load %arg2[%c0_10, %c0_11] : memref<128x512xf32, #tpu.memory_space<vmem>>, vector<128x512xf32>
    %cst_12 = arith.constant dense<0.000000e+00> : vector<1x512xf32>
    %12 = tpu.matmul %7, %11, %cst_12 {dimension_numbers = #tpu.dot_dimension_numbers<[1], [0], [0], [1], [0, 0, 1, 1], [], []>} : vector<1x128xf32>, vector<128x512xf32>, vector<1x512xf32> -> vector<1x512xf32>
    %13 = arith.addf %10, %12 : vector<1x512xf32>
    %14 = vector.extract_strided_slice %13 {offsets = [0, 0], sizes = [1, 384], strides = [1, 1]} : vector<1x512xf32> to vector<1x384xf32>
    %15 = arith.negf %14 : vector<1x384xf32>
    %16 = math.exp %15 : vector<1x384xf32>
    %cst_13 = arith.constant 1.000000e+00 : f32
    %17 = vector.broadcast %cst_13 : f32 to vector<1x384xf32>
    %18 = arith.addf %17, %16 : vector<1x384xf32>
    %19 = arith.divf %17, %18 : vector<1x384xf32>
    %20 = vector.extract_strided_slice %13 {offsets = [0, 384], sizes = [1, 128], strides = [1, 1]} : vector<1x512xf32> to vector<1x128xf32>
    %21 = math.tanh %20 : vector<1x128xf32>
    %22 = vector.extract_strided_slice %19 {offsets = [0, 0], sizes = [1, 128], strides = [1, 1]} : vector<1x384xf32> to vector<1x128xf32>
    %23 = vector.extract_strided_slice %19 {offsets = [0, 128], sizes = [1, 128], strides = [1, 1]} : vector<1x384xf32> to vector<1x128xf32>
    %24 = vector.extract_strided_slice %19 {offsets = [0, 256], sizes = [1, 128], strides = [1, 1]} : vector<1x384xf32> to vector<1x128xf32>
    %25 = arith.mulf %23, %8 : vector<1x128xf32>
    %26 = arith.mulf %22, %21 : vector<1x128xf32>
    %27 = arith.addf %25, %26 : vector<1x128xf32>
    %28 = math.tanh %27 : vector<1x128xf32>
    %29 = arith.mulf %24, %28 : vector<1x128xf32>
    %30 = arith.index_cast %c0_i32 : i32 to index
    %c0_14 = arith.constant 0 : index
    %31 = vector.load %arg8[%30, %c0_14] : memref<8x128xf32, #tpu.memory_space<vmem>>, vector<1x128xf32>
    tpu.vector_store %arg8[%30, %c0_14], %29 {strides = array<i32>} : memref<8x128xf32, #tpu.memory_space<vmem>>, vector<1x128xf32>,
    %c1_i32 = arith.constant 1 : i32
    %32 = arith.index_cast %c1_i32 : i32 to index
    %c0_15 = arith.constant 0 : index
    %33 = vector.load %arg7[%32, %c0_15] : memref<8x512xf32, #tpu.memory_space<vmem>>, vector<1x512xf32>
    %c0_16 = arith.constant 0 : index
    %c0_17 = arith.constant 0 : index
    %34 = vector.load %arg2[%c0_16, %c0_17] : memref<128x512xf32, #tpu.memory_space<vmem>>, vector<128x512xf32>
    %cst_18 = arith.constant dense<0.000000e+00> : vector<1x512xf32>
    %35 = tpu.matmul %29, %34, %cst_18 {dimension_numbers = #tpu.dot_dimension_numbers<[1], [0], [0], [1], [0, 0, 1, 1], [], []>} : vector<1x128xf32>, vector<128x512xf32>, vector<1x512xf32> -> vector<1x512xf32>
    %36 = arith.addf %33, %35 : vector<1x512xf32>
    %37 = vector.extract_strided_slice %36 {offsets = [0, 0], sizes = [1, 384], strides = [1, 1]} : vector<1x512xf32> to vector<1x384xf32>
    %38 = arith.negf %37 : vector<1x384xf32>
    %39 = math.exp %38 : vector<1x384xf32>
    %cst_19 = arith.constant 1.000000e+00 : f32
    %40 = vector.broadcast %cst_19 : f32 to vector<1x384xf32>
    %41 = arith.addf %40, %39 : vector<1x384xf32>
    %42 = arith.divf %40, %41 : vector<1x384xf32>
    %43 = vector.extract_strided_slice %36 {offsets = [0, 384], sizes = [1, 128], strides = [1, 1]} : vector<1x512xf32> to vector<1x128xf32>
    %44 = math.tanh %43 : vector<1x128xf32>
    %45 = vector.extract_strided_slice %42 {offsets = [0, 0], sizes = [1, 128], strides = [1, 1]} : vector<1x384xf32> to vector<1x128xf32>
    %46 = vector.extract_strided_slice %42 {offsets = [0, 128], sizes = [1, 128], strides = [1, 1]} : vector<1x384xf32> to vector<1x128xf32>
    %47 = vector.extract_strided_slice %42 {offsets = [0, 256], sizes = [1, 128], strides = [1, 1]} : vector<1x384xf32> to vector<1x128xf32>
    %48 = arith.mulf %46, %27 : vector<1x128xf32>
    %49 = arith.mulf %45, %44 : vector<1x128xf32>
    %50 = arith.addf %48, %49 : vector<1x128xf32>
    %51 = math.tanh %50 : vector<1x128xf32>
    %52 = arith.mulf %47, %51 : vector<1x128xf32>
    %53 = arith.index_cast %c1_i32 : i32 to index
    %c0_20 = arith.constant 0 : index
    %54 = vector.load %arg8[%53, %c0_20] : memref<8x128xf32, #tpu.memory_space<vmem>>, vector<1x128xf32>
    tpu.vector_store %arg8[%53, %c0_20], %52 {strides = array<i32>} : memref<8x128xf32, #tpu.memory_space<vmem>>, vector<1x128xf32>,
    %c2_i32 = arith.constant 2 : i32
    %55 = arith.index_cast %c2_i32 : i32 to index
    %c0_21 = arith.constant 0 : index
    %56 = vector.load %arg7[%55, %c0_21] : memref<8x512xf32, #tpu.memory_space<vmem>>, vector<1x512xf32>
    %c0_22 = arith.constant 0 : index
    %c0_23 = arith.constant 0 : index
    %57 = vector.load %arg2[%c0_22, %c0_23] : memref<128x512xf32, #tpu.memory_space<vmem>>, vector<128x512xf32>
    %cst_24 = arith.constant dense<0.000000e+00> : vector<1x512xf32>
    %58 = tpu.matmul %52, %57, %cst_24 {dimension_numbers = #tpu.dot_dimension_numbers<[1], [0], [0], [1], [0, 0, 1, 1], [], []>} : vector<1x128xf32>, vector<128x512xf32>, vector<1x512xf32> -> vector<1x512xf32>
    %59 = arith.addf %56, %58 : vector<1x512xf32>
    %60 = vector.extract_strided_slice %59 {offsets = [0, 0], sizes = [1, 384], strides = [1, 1]} : vector<1x512xf32> to vector<1x384xf32>
    %61 = arith.negf %60 : vector<1x384xf32>
    %62 = math.exp %61 : vector<1x384xf32>
    %cst_25 = arith.constant 1.000000e+00 : f32
    %63 = vector.broadcast %cst_25 : f32 to vector<1x384xf32>
    %64 = arith.addf %63, %62 : vector<1x384xf32>
    %65 = arith.divf %63, %64 : vector<1x384xf32>
    %66 = vector.extract_strided_slice %59 {offsets = [0, 384], sizes = [1, 128], strides = [1, 1]} : vector<1x512xf32> to vector<1x128xf32>
    %67 = math.tanh %66 : vector<1x128xf32>
    %68 = vector.extract_strided_slice %65 {offsets = [0, 0], sizes = [1, 128], strides = [1, 1]} : vector<1x384xf32> to vector<1x128xf32>
    %69 = vector.extract_strided_slice %65 {offsets = [0, 128], sizes = [1, 128], strides = [1, 1]} : vector<1x384xf32> to vector<1x128xf32>
    %70 = vector.extract_strided_slice %65 {offsets = [0, 256], sizes = [1, 128], strides = [1, 1]} : vector<1x384xf32> to vector<1x128xf32>
    %71 = arith.mulf %69, %50 : vector<1x128xf32>
    %72 = arith.mulf %68, %67 : vector<1x128xf32>
    %73 = arith.addf %71, %72 : vector<1x128xf32>
    %74 = math.tanh %73 : vector<1x128xf32>
    %75 = arith.mulf %70, %74 : vector<1x128xf32>
    %76 = arith.index_cast %c2_i32 : i32 to index
    %c0_26 = arith.constant 0 : index
    %77 = vector.load %arg8[%76, %c0_26] : memref<8x128xf32, #tpu.memory_space<vmem>>, vector<1x128xf32>
    tpu.vector_store %arg8[%76, %c0_26], %75 {strides = array<i32>} : memref<8x128xf32, #tpu.memory_space<vmem>>, vector<1x128xf32>,
    %c3_i32 = arith.constant 3 : i32
    %78 = arith.index_cast %c3_i32 : i32 to index
    %c0_27 = arith.constant 0 : index
    %79 = vector.load %arg7[%78, %c0_27] : memref<8x512xf32, #tpu.memory_space<vmem>>, vector<1x512xf32>
    %c0_28 = arith.constant 0 : index
    %c0_29 = arith.constant 0 : index
    %80 = vector.load %arg2[%c0_28, %c0_29] : memref<128x512xf32, #tpu.memory_space<vmem>>, vector<128x512xf32>
    %cst_30 = arith.constant dense<0.000000e+00> : vector<1x512xf32>
    %81 = tpu.matmul %75, %80, %cst_30 {dimension_numbers = #tpu.dot_dimension_numbers<[1], [0], [0], [1], [0, 0, 1, 1], [], []>} : vector<1x128xf32>, vector<128x512xf32>, vector<1x512xf32> -> vector<1x512xf32>
    %82 = arith.addf %79, %81 : vector<1x512xf32>
    %83 = vector.extract_strided_slice %82 {offsets = [0, 0], sizes = [1, 384], strides = [1, 1]} : vector<1x512xf32> to vector<1x384xf32>
    %84 = arith.negf %83 : vector<1x384xf32>
    %85 = math.exp %84 : vector<1x384xf32>
    %cst_31 = arith.constant 1.000000e+00 : f32
    %86 = vector.broadcast %cst_31 : f32 to vector<1x384xf32>
    %87 = arith.addf %86, %85 : vector<1x384xf32>
    %88 = arith.divf %86, %87 : vector<1x384xf32>
    %89 = vector.extract_strided_slice %82 {offsets = [0, 384], sizes = [1, 128], strides = [1, 1]} : vector<1x512xf32> to vector<1x128xf32>
    %90 = math.tanh %89 : vector<1x128xf32>
    %91 = vector.extract_strided_slice %88 {offsets = [0, 0], sizes = [1, 128], strides = [1, 1]} : vector<1x384xf32> to vector<1x128xf32>
    %92 = vector.extract_strided_slice %88 {offsets = [0, 128], sizes = [1, 128], strides = [1, 1]} : vector<1x384xf32> to vector<1x128xf32>
    %93 = vector.extract_strided_slice %88 {offsets = [0, 256], sizes = [1, 128], strides = [1, 1]} : vector<1x384xf32> to vector<1x128xf32>
    %94 = arith.mulf %92, %73 : vector<1x128xf32>
    %95 = arith.mulf %91, %90 : vector<1x128xf32>
    %96 = arith.addf %94, %95 : vector<1x128xf32>
    %97 = math.tanh %96 : vector<1x128xf32>
    %98 = arith.mulf %93, %97 : vector<1x128xf32>
    %99 = arith.index_cast %c3_i32 : i32 to index
    %c0_32 = arith.constant 0 : index
    %100 = vector.load %arg8[%99, %c0_32] : memref<8x128xf32, #tpu.memory_space<vmem>>, vector<1x128xf32>
    tpu.vector_store %arg8[%99, %c0_32], %98 {strides = array<i32>} : memref<8x128xf32, #tpu.memory_space<vmem>>, vector<1x128xf32>,
    %c4_i32 = arith.constant 4 : i32
    %101 = arith.index_cast %c4_i32 : i32 to index
    %c0_33 = arith.constant 0 : index
    %102 = vector.load %arg7[%101, %c0_33] : memref<8x512xf32, #tpu.memory_space<vmem>>, vector<1x512xf32>
    %c0_34 = arith.constant 0 : index
    %c0_35 = arith.constant 0 : index
    %103 = vector.load %arg2[%c0_34, %c0_35] : memref<128x512xf32, #tpu.memory_space<vmem>>, vector<128x512xf32>
    %cst_36 = arith.constant dense<0.000000e+00> : vector<1x512xf32>
    %104 = tpu.matmul %98, %103, %cst_36 {dimension_numbers = #tpu.dot_dimension_numbers<[1], [0], [0], [1], [0, 0, 1, 1], [], []>} : vector<1x128xf32>, vector<128x512xf32>, vector<1x512xf32> -> vector<1x512xf32>
    %105 = arith.addf %102, %104 : vector<1x512xf32>
    %106 = vector.extract_strided_slice %105 {offsets = [0, 0], sizes = [1, 384], strides = [1, 1]} : vector<1x512xf32> to vector<1x384xf32>
    %107 = arith.negf %106 : vector<1x384xf32>
    %108 = math.exp %107 : vector<1x384xf32>
    %cst_37 = arith.constant 1.000000e+00 : f32
    %109 = vector.broadcast %cst_37 : f32 to vector<1x384xf32>
    %110 = arith.addf %109, %108 : vector<1x384xf32>
    %111 = arith.divf %109, %110 : vector<1x384xf32>
    %112 = vector.extract_strided_slice %105 {offsets = [0, 384], sizes = [1, 128], strides = [1, 1]} : vector<1x512xf32> to vector<1x128xf32>
    %113 = math.tanh %112 : vector<1x128xf32>
    %114 = vector.extract_strided_slice %111 {offsets = [0, 0], sizes = [1, 128], strides = [1, 1]} : vector<1x384xf32> to vector<1x128xf32>
    %115 = vector.extract_strided_slice %111 {offsets = [0, 128], sizes = [1, 128], strides = [1, 1]} : vector<1x384xf32> to vector<1x128xf32>
    %116 = vector.extract_strided_slice %111 {offsets = [0, 256], sizes = [1, 128], strides = [1, 1]} : vector<1x384xf32> to vector<1x128xf32>
    %117 = arith.mulf %115, %96 : vector<1x128xf32>
    %118 = arith.mulf %114, %113 : vector<1x128xf32>
    %119 = arith.addf %117, %118 : vector<1x128xf32>
    %120 = math.tanh %119 : vector<1x128xf32>
    %121 = arith.mulf %116, %120 : vector<1x128xf32>
    %122 = arith.index_cast %c4_i32 : i32 to index
    %c0_38 = arith.constant 0 : index
    %123 = vector.load %arg8[%122, %c0_38] : memref<8x128xf32, #tpu.memory_space<vmem>>, vector<1x128xf32>
    tpu.vector_store %arg8[%122, %c0_38], %121 {strides = array<i32>} : memref<8x128xf32, #tpu.memory_space<vmem>>, vector<1x128xf32>,
    %c5_i32 = arith.constant 5 : i32
    %124 = arith.index_cast %c5_i32 : i32 to index
    %c0_39 = arith.constant 0 : index
    %125 = vector.load %arg7[%124, %c0_39] : memref<8x512xf32, #tpu.memory_space<vmem>>, vector<1x512xf32>
    %c0_40 = arith.constant 0 : index
    %c0_41 = arith.constant 0 : index
    %126 = vector.load %arg2[%c0_40, %c0_41] : memref<128x512xf32, #tpu.memory_space<vmem>>, vector<128x512xf32>
    %cst_42 = arith.constant dense<0.000000e+00> : vector<1x512xf32>
    %127 = tpu.matmul %121, %126, %cst_42 {dimension_numbers = #tpu.dot_dimension_numbers<[1], [0], [0], [1], [0, 0, 1, 1], [], []>} : vector<1x128xf32>, vector<128x512xf32>, vector<1x512xf32> -> vector<1x512xf32>
    %128 = arith.addf %125, %127 : vector<1x512xf32>
    %129 = vector.extract_strided_slice %128 {offsets = [0, 0], sizes = [1, 384], strides = [1, 1]} : vector<1x512xf32> to vector<1x384xf32>
    %130 = arith.negf %129 : vector<1x384xf32>
    %131 = math.exp %130 : vector<1x384xf32>
    %cst_43 = arith.constant 1.000000e+00 : f32
    %132 = vector.broadcast %cst_43 : f32 to vector<1x384xf32>
    %133 = arith.addf %132, %131 : vector<1x384xf32>
    %134 = arith.divf %132, %133 : vector<1x384xf32>
    %135 = vector.extract_strided_slice %128 {offsets = [0, 384], sizes = [1, 128], strides = [1, 1]} : vector<1x512xf32> to vector<1x128xf32>
    %136 = math.tanh %135 : vector<1x128xf32>
    %137 = vector.extract_strided_slice %134 {offsets = [0, 0], sizes = [1, 128], strides = [1, 1]} : vector<1x384xf32> to vector<1x128xf32>
    %138 = vector.extract_strided_slice %134 {offsets = [0, 128], sizes = [1, 128], strides = [1, 1]} : vector<1x384xf32> to vector<1x128xf32>
    %139 = vector.extract_strided_slice %134 {offsets = [0, 256], sizes = [1, 128], strides = [1, 1]} : vector<1x384xf32> to vector<1x128xf32>
    %140 = arith.mulf %138, %119 : vector<1x128xf32>
    %141 = arith.mulf %137, %136 : vector<1x128xf32>
    %142 = arith.addf %140, %141 : vector<1x128xf32>
    %143 = math.tanh %142 : vector<1x128xf32>
    %144 = arith.mulf %139, %143 : vector<1x128xf32>
    %145 = arith.index_cast %c5_i32 : i32 to index
    %c0_44 = arith.constant 0 : index
    %146 = vector.load %arg8[%145, %c0_44] : memref<8x128xf32, #tpu.memory_space<vmem>>, vector<1x128xf32>
    tpu.vector_store %arg8[%145, %c0_44], %144 {strides = array<i32>} : memref<8x128xf32, #tpu.memory_space<vmem>>, vector<1x128xf32>,
    %c6_i32 = arith.constant 6 : i32
    %147 = arith.index_cast %c6_i32 : i32 to index
    %c0_45 = arith.constant 0 : index
    %148 = vector.load %arg7[%147, %c0_45] : memref<8x512xf32, #tpu.memory_space<vmem>>, vector<1x512xf32>
    %c0_46 = arith.constant 0 : index
    %c0_47 = arith.constant 0 : index
    %149 = vector.load %arg2[%c0_46, %c0_47] : memref<128x512xf32, #tpu.memory_space<vmem>>, vector<128x512xf32>
    %cst_48 = arith.constant dense<0.000000e+00> : vector<1x512xf32>
    %150 = tpu.matmul %144, %149, %cst_48 {dimension_numbers = #tpu.dot_dimension_numbers<[1], [0], [0], [1], [0, 0, 1, 1], [], []>} : vector<1x128xf32>, vector<128x512xf32>, vector<1x512xf32> -> vector<1x512xf32>
    %151 = arith.addf %148, %150 : vector<1x512xf32>
    %152 = vector.extract_strided_slice %151 {offsets = [0, 0], sizes = [1, 384], strides = [1, 1]} : vector<1x512xf32> to vector<1x384xf32>
    %153 = arith.negf %152 : vector<1x384xf32>
    %154 = math.exp %153 : vector<1x384xf32>
    %cst_49 = arith.constant 1.000000e+00 : f32
    %155 = vector.broadcast %cst_49 : f32 to vector<1x384xf32>
    %156 = arith.addf %155, %154 : vector<1x384xf32>
    %157 = arith.divf %155, %156 : vector<1x384xf32>
    %158 = vector.extract_strided_slice %151 {offsets = [0, 384], sizes = [1, 128], strides = [1, 1]} : vector<1x512xf32> to vector<1x128xf32>
    %159 = math.tanh %158 : vector<1x128xf32>
    %160 = vector.extract_strided_slice %157 {offsets = [0, 0], sizes = [1, 128], strides = [1, 1]} : vector<1x384xf32> to vector<1x128xf32>
    %161 = vector.extract_strided_slice %157 {offsets = [0, 128], sizes = [1, 128], strides = [1, 1]} : vector<1x384xf32> to vector<1x128xf32>
    %162 = vector.extract_strided_slice %157 {offsets = [0, 256], sizes = [1, 128], strides = [1, 1]} : vector<1x384xf32> to vector<1x128xf32>
    %163 = arith.mulf %161, %142 : vector<1x128xf32>
    %164 = arith.mulf %160, %159 : vector<1x128xf32>
    %165 = arith.addf %163, %164 : vector<1x128xf32>
    %166 = math.tanh %165 : vector<1x128xf32>
    %167 = arith.mulf %162, %166 : vector<1x128xf32>
    %168 = arith.index_cast %c6_i32 : i32 to index
    %c0_50 = arith.constant 0 : index
    %169 = vector.load %arg8[%168, %c0_50] : memref<8x128xf32, #tpu.memory_space<vmem>>, vector<1x128xf32>
    tpu.vector_store %arg8[%168, %c0_50], %167 {strides = array<i32>} : memref<8x128xf32, #tpu.memory_space<vmem>>, vector<1x128xf32>,
    %c7_i32 = arith.constant 7 : i32
    %170 = arith.index_cast %c7_i32 : i32 to index
    %c0_51 = arith.constant 0 : index
    %171 = vector.load %arg7[%170, %c0_51] : memref<8x512xf32, #tpu.memory_space<vmem>>, vector<1x512xf32>
    %c0_52 = arith.constant 0 : index
    %c0_53 = arith.constant 0 : index
    %172 = vector.load %arg2[%c0_52, %c0_53] : memref<128x512xf32, #tpu.memory_space<vmem>>, vector<128x512xf32>
    %cst_54 = arith.constant dense<0.000000e+00> : vector<1x512xf32>
    %173 = tpu.matmul %167, %172, %cst_54 {dimension_numbers = #tpu.dot_dimension_numbers<[1], [0], [0], [1], [0, 0, 1, 1], [], []>} : vector<1x128xf32>, vector<128x512xf32>, vector<1x512xf32> -> vector<1x512xf32>
    %174 = arith.addf %171, %173 : vector<1x512xf32>
    %175 = vector.extract_strided_slice %174 {offsets = [0, 0], sizes = [1, 384], strides = [1, 1]} : vector<1x512xf32> to vector<1x384xf32>
    %176 = arith.negf %175 : vector<1x384xf32>
    %177 = math.exp %176 : vector<1x384xf32>
    %cst_55 = arith.constant 1.000000e+00 : f32
    %178 = vector.broadcast %cst_55 : f32 to vector<1x384xf32>
    %179 = arith.addf %178, %177 : vector<1x384xf32>
    %180 = arith.divf %178, %179 : vector<1x384xf32>
    %181 = vector.extract_strided_slice %174 {offsets = [0, 384], sizes = [1, 128], strides = [1, 1]} : vector<1x512xf32> to vector<1x128xf32>
    %182 = math.tanh %181 : vector<1x128xf32>
    %183 = vector.extract_strided_slice %180 {offsets = [0, 0], sizes = [1, 128], strides = [1, 1]} : vector<1x384xf32> to vector<1x128xf32>
    %184 = vector.extract_strided_slice %180 {offsets = [0, 128], sizes = [1, 128], strides = [1, 1]} : vector<1x384xf32> to vector<1x128xf32>
    %185 = vector.extract_strided_slice %180 {offsets = [0, 256], sizes = [1, 128], strides = [1, 1]} : vector<1x384xf32> to vector<1x128xf32>
    %186 = arith.mulf %184, %165 : vector<1x128xf32>
    %187 = arith.mulf %183, %182 : vector<1x128xf32>
    %188 = arith.addf %186, %187 : vector<1x128xf32>
    %189 = math.tanh %188 : vector<1x128xf32>
    %190 = arith.mulf %185, %189 : vector<1x128xf32>
    %191 = arith.index_cast %c7_i32 : i32 to index
    %c0_56 = arith.constant 0 : index
    %192 = vector.load %arg8[%191, %c0_56] : memref<8x128xf32, #tpu.memory_space<vmem>>, vector<1x128xf32>
    tpu.vector_store %arg8[%191, %c0_56], %190 {strides = array<i32>} : memref<8x128xf32, #tpu.memory_space<vmem>>, vector<1x128xf32>,
    %c8_i32 = arith.constant 8 : i32
    %c0_57 = arith.constant 0 : index
    %c0_58 = arith.constant 0 : index
    %193 = vector.load %arg8[%c0_57, %c0_58] : memref<8x128xf32, #tpu.memory_space<vmem>>, vector<8x128xf32>
    %c0_59 = arith.constant 0 : index
    %c0_60 = arith.constant 0 : index
    %194 = vector.load %arg4[%c0_59, %c0_60] : memref<128x128xf32, #tpu.memory_space<vmem>>, vector<128x128xf32>
    %cst_61 = arith.constant dense<0.000000e+00> : vector<8x128xf32>
    %195 = tpu.matmul %193, %194, %cst_61 {dimension_numbers = #tpu.dot_dimension_numbers<[1], [0], [0], [1], [0, 0, 1, 1], [], []>} : vector<8x128xf32>, vector<128x128xf32>, vector<8x128xf32> -> vector<8x128xf32>
    %c0_62 = arith.constant 0 : index
    %c0_63 = arith.constant 0 : index
    %196 = vector.load %arg5[%c0_62, %c0_63] : memref<1x128xf32, #tpu.memory_space<vmem>>, vector<1x128xf32>
    %197 = vector.broadcast %196 : vector<1x128xf32> to vector<8x128xf32>
    %198 = arith.addf %195, %197 : vector<8x128xf32>
    %199 = math.tanh %198 : vector<8x128xf32>
    %c0_64 = arith.constant 0 : index
    %c0_65 = arith.constant 0 : index
    %200 = vector.load %arg6[%c0_64, %c0_65] : memref<8x128xf32, #tpu.memory_space<vmem>>, vector<8x128xf32>
    tpu.vector_store %arg6[%c0_64, %c0_65], %199 {strides = array<i32>} : memref<8x128xf32, #tpu.memory_space<vmem>>, vector<8x128xf32>,
    return
  }
}

</mosaic_0001>

<llo_original>
// kernel: tpu_custom_call.1
$region0: #{tpu_custom_call.1}
  #allocation0 [shape = 'u32[]', space=smem, size = 0x4, offset = 0x4, fixed_abs, tag = 'smem constant byte address 0x4 - core index']
  #allocation1 [shape = 'u32[144,128]{1,0:T(1,128)}', space=vmem, size = 0x12000, scoped, tag = 'internal scratch']
  #allocation2 [shape = 'f32[8,512]{1,0:T(8,128)}', space=vmem, size = 0x4000, scoped, tag = 'scratch operand']
  #allocation3 [shape = 'f32[8,128]{1,0:T(8,128)}', space=vmem, size = 0x1000, scoped, tag = 'scratch operand']
  %s0 = inlined_call_operand.vmem [shape: f32[8,4], index: 0, kind: input, shape index: {}]
  %s1 = inlined_call_operand.hbm [shape: f32[4,512], index: 1, kind: input, shape index: {}]
  %s2 = inlined_call_operand.hbm [shape: f32[128,512], index: 2, kind: input, shape index: {}]
  %s3 = inlined_call_operand.vmem [shape: f32[1,512], index: 3, kind: input, shape index: {}]
  %s4 = inlined_call_operand.hbm [shape: f32[128,128], index: 4, kind: input, shape index: {}]
  %s5 = inlined_call_operand.vmem [shape: f32[1,128], index: 5, kind: input, shape index: {}]
  %s6 = inlined_call_operand.hbm [shape: f32[8,128], index: 6, kind: output, shape index: {}]
  %s7 = sld [smem:[#allocation0]]
  $region46: #{tpu_custom_call.1} parent=0
    _
  %s9 = ssub.s32 1, %s7
  %s10 = scalar_select 0, %s9, %s7
  $region1: #{tpu_custom_call.1} parent=0
    #allocation4 [shape = 'u8[8192]{0}', space=vmem, size = 0x2000, scoped, tag = 'input window, operand 1, single buffered']
    #allocation5 [shape = 's32[1]{0}', space=sflag, size = 0x4, scoped, tag = 'scoped memory for tpu_custom_call.1']
    #allocation6 [shape = 's32[1]{0}', space=sflag, size = 0x4, scoped, tag = 'scoped memory for tpu_custom_call.1']
    #allocation7 [shape = 'u8[262144]{0}', space=vmem, size = 0x40000, scoped, tag = 'input window, operand 2, single buffered']
    #allocation8 [shape = 's32[1]{0}', space=sflag, size = 0x4, scoped, tag = 'scoped memory for tpu_custom_call.1']
    #allocation9 [shape = 'u8[65536]{0}', space=vmem, size = 0x10000, scoped, tag = 'input window, operand 4, single buffered']
    #allocation10 [shape = 'u8[4096]{0}', space=vmem, size = 0x1000, scoped, tag = 'output window, operand 0, single buffered']
    %11 = vsyncpa [#allocation5], 0
    %12 = vsyncpa [#allocation8], 0
    %13 = vsyncpa [#allocation6], 0
    // Predicated region
    $region2: #{tpu_custom_call.1} parent=1 // pred_check
      _
    $region3: #{tpu_custom_call.1} parent=1 // pred_check_branch
      %15 = sbr.rel (0) target = $region5
    $region4: #{tpu_custom_call.1} parent=1 // pred_region
      _
    $region5: #{tpu_custom_call.1} parent=1 // pred_fallthru
      _
    // Predicated region
    $region6: #{tpu_custom_call.1} parent=1 // pred_check
      _
    $region7: #{tpu_custom_call.1} parent=1 // pred_check_branch
      %17 = sbr.rel (0) target = $region9
    $region8: #{tpu_custom_call.1} parent=1 // pred_region
      %s19 = ssub.s32 256, 256
      %20 = vsyncadd [#allocation5], %s19
      %s22 = sshll.u32 [#allocation4], 4
      %s23 = int_to_ptr.vmem [resolvable:$true] %s22
      %25 = dma.hbm_to_vmem [thread:$0]  %s1, 256, %s23, [#allocation5]
    $region9: #{tpu_custom_call.1} parent=1 // pred_fallthru
      _
    // Predicated region
    $region10: #{tpu_custom_call.1} parent=1 // pred_check
      _
    $region11: #{tpu_custom_call.1} parent=1 // pred_check_branch
      %27 = sbr.rel (0) target = $region13
    $region12: #{tpu_custom_call.1} parent=1 // pred_region
      %s29 = ssub.s32 8192, 8192
      %30 = vsyncadd [#allocation8], %s29
      %s31 = sshll.u32 [#allocation7], 4
      %s32 = int_to_ptr.vmem [resolvable:$true] %s31
      %37 = dma.hbm_to_vmem [thread:$0]  %s2, 8192, %s32, [#allocation8], 512, 512, 32
    $region13: #{tpu_custom_call.1} parent=1 // pred_fallthru
      _
    // Predicated region
    $region14: #{tpu_custom_call.1} parent=1 // pred_check
      _
    $region15: #{tpu_custom_call.1} parent=1 // pred_check_branch
      %39 = sbr.rel (0) target = $region17
    $region16: #{tpu_custom_call.1} parent=1 // pred_region
      _
    $region17: #{tpu_custom_call.1} parent=1 // pred_fallthru
      _
    // Predicated region
    $region18: #{tpu_custom_call.1} parent=1 // pred_check
      _
    $region19: #{tpu_custom_call.1} parent=1 // pred_check_branch
      %41 = sbr.rel (0) target = $region21
    $region20: #{tpu_custom_call.1} parent=1 // pred_region
      %s43 = ssub.s32 2048, 2048
      %44 = vsyncadd [#allocation8], %s43
      %s45 = sshll.u32 [#allocation9], 4
      %s46 = int_to_ptr.vmem [resolvable:$true] %s45
      %51 = dma.hbm_to_vmem [thread:$0]  %s4, 2048, %s46, [#allocation8], 128, 128, 8
    $region21: #{tpu_custom_call.1} parent=1 // pred_fallthru
      _
    // Predicated region
    $region22: #{tpu_custom_call.1} parent=1 // pred_check
      _
    $region23: #{tpu_custom_call.1} parent=1 // pred_check_branch
      %53 = sbr.rel (0) target = $region25
    $region24: #{tpu_custom_call.1} parent=1 // pred_region
      _
    $region25: #{tpu_custom_call.1} parent=1 // pred_fallthru
      _
    // Predicated region
    $region26: #{tpu_custom_call.1} parent=1 // pred_check
      _
    $region27: #{tpu_custom_call.1} parent=1 // pred_check_branch
      %55 = sbr.rel (0) target = $region29
    $region28: #{tpu_custom_call.1} parent=1 // pred_region
      %56 = dma.done [#allocation5], 256
    $region29: #{tpu_custom_call.1} parent=1 // pred_fallthru
      _
    // Predicated region
    $region30: #{tpu_custom_call.1} parent=1 // pred_check
      _
    $region31: #{tpu_custom_call.1} parent=1 // pred_check_branch
      %58 = sbr.rel (0) target = $region33
    $region32: #{tpu_custom_call.1} parent=1 // pred_region
      %59 = dma.done [#allocation8], 8192
    $region33: #{tpu_custom_call.1} parent=1 // pred_fallthru
      _
    // Predicated region
    $region34: #{tpu_custom_call.1} parent=1 // pred_check
      _
    $region35: #{tpu_custom_call.1} parent=1 // pred_check_branch
      %61 = sbr.rel (0) target = $region37
    $region36: #{tpu_custom_call.1} parent=1 // pred_region
      %62 = dma.done [#allocation8], 2048
    $region37: #{tpu_custom_call.1} parent=1 // pred_fallthru
      _
    %v63 = vld [vmem:[%s0] sm:$0xff]
    %v64 = vld [vmem:[#allocation4] sm:$0xff]
    %v65 = vld [vmem:[#allocation4 + $0x8] sm:$0xff]
    %v66 = vld [vmem:[%s3] sm:$0xf]
    %v68 = vlaneseq
    %v69 = vshrl.u32 %v68, 7
    %v70 = vsub.s32 0, %v69
    %v71 = vrot.slane %v66, %v70
    %v72 = vlaneseq
    %v73 = vshrl.u32 %v72, 7
    %v74 = vsub.s32 1, %v73
    %v75 = vrot.slane %v66, %v74
    %v76 = vlaneseq
    %v77 = vshrl.u32 %v76, 7
    %v78 = vsub.s32 2, %v77
    %v79 = vrot.slane %v66, %v78
    %v80 = vlaneseq
    %v81 = vshrl.u32 %v80, 7
    %v82 = vsub.s32 3, %v81
    %v83 = vrot.slane %v66, %v82
    %v90 = vcombine.high %v64, %v64
    %v91 = vcombine.high %v65, %v65
    %vm92 = vcmask 31744
    %v94 = vsel %vm92, %v63, 0
    %vm96 = vcmask 1043456
    %v97 = vsel %vm96, %v64, 0
    %v99 = vsel %vm96, %v90, 0
    %v101 = vsel %vm96, %v65, 0
    %v103 = vsel %vm96, %v91, 0
    %105 = vmatprep.subr.mxu0 %v99
    %106 = vmatpush1.msra.mxu0 %v97
    %107 = vmatprep.subr.mxu0 0.0
    %108 = vmatpush1.msra.mxu0 0.0
    %109 = vmatprep.subr.mxu0 0.0
    %110 = vmatpush1.msra.mxu0 0.0
    %111 = vmatprep.subr.mxu0 0.0
    %112 = vmatpush1.msra.mxu0 0.0
    %113 = vmatprep.subr.mxu0 0.0
    %114 = vmatpush1.msra.mxu0 0.0
    %115 = vmatprep.subr.mxu0 0.0
    %116 = vmatpush1.msra.mxu0 0.0
    %117 = vmatprep.subr.mxu0 0.0
    %118 = vmatpush1.msra.mxu0 0.0
    %119 = vmatprep.subr.mxu0 0.0
    %120 = vmatpush1.msra.mxu0 0.0
    %121 = vmatprep.subr.mxu0 0.0
    %122 = vmatpush1.msra.mxu0 0.0
    %123 = vmatprep.subr.mxu0 0.0
    %124 = vmatpush1.msra.mxu0 0.0
    %125 = vmatprep.subr.mxu0 0.0
    %126 = vmatpush1.msra.mxu0 0.0
    %127 = vmatprep.subr.mxu0 0.0
    %128 = vmatpush1.msra.mxu0 0.0
    %129 = vmatprep.subr.mxu0 0.0
    %130 = vmatpush1.msra.mxu0 0.0
    %131 = vmatprep.subr.mxu0 0.0
    %132 = vmatpush1.msra.mxu0 0.0
    %133 = vmatprep.subr.mxu0 0.0
    %134 = vmatpush1.msra.mxu0 0.0
    %135 = vmatprep.subr.mxu0 0.0
    %136 = vmatpush1.msra.mxu0 0.0
    %137 = vmatprep.subr.mxu0 0.0
    %138 = vmatpush1.msra.mxu0 0.0
    %139 = vmatprep.subr.mxu0 0.0
    %140 = vmatpush1.msra.mxu0 0.0
    %141 = vmatprep.subr.mxu0 0.0
    %142 = vmatpush1.msra.mxu0 0.0
    %143 = vmatprep.subr.mxu0 0.0
    %144 = vmatpush1.msra.mxu0 0.0
    %145 = vmatprep.subr.mxu0 0.0
    %146 = vmatpush1.msra.mxu0 0.0
    %147 = vmatprep.subr.mxu0 0.0
    %148 = vmatpush1.msra.mxu0 0.0
    %149 = vmatprep.subr.mxu0 0.0
    %150 = vmatpush1.msra.mxu0 0.0
    %151 = vmatprep.subr.mxu0 0.0
    %152 = vmatpush1.msra.mxu0 0.0
    %153 = vmatprep.subr.mxu0 0.0
    %154 = vmatpush1.msra.mxu0 0.0
    %155 = vmatprep.subr.mxu0 0.0
    %156 = vmatpush1.msra.mxu0 0.0
    %157 = vmatprep.subr.mxu0 0.0
    %158 = vmatpush1.msra.mxu0 0.0
    %159 = vmatprep.subr.mxu0 0.0
    %160 = vmatpush1.msra.mxu0 0.0
    %161 = vmatprep.subr.mxu0 0.0
    %162 = vmatpush1.msra.mxu0 0.0
    %163 = vmatprep.subr.mxu0 0.0
    %164 = vmatpush1.msra.mxu0 0.0
    %165 = vmatprep.subr.mxu0 0.0
    %166 = vmatpush1.msra.mxu0 0.0
    %167 = vmatprep.subr.mxu0 0.0
    %168 = vmatpush1.msra.mxu0 0.0
    %169 = vmatprep.mubr.f32.mxu0 0.0
    %170 = vmatmul.mubr.f32.gmra.mrb[0].mxu0 %v94
    %v171 = vpop.f32.mrb[0].mxu0
    %v172 = vadd.f32 %v71, %v171
    %v173 = vpop.f32.mrb[0].mxu0
    %v174 = vadd.f32 %v75, %v173
    %175 = vdwg.mxu0
    %176 = vmatprep.subr.mxu0 %v103
    %177 = vmatpush1.msra.mxu0 %v101
    %178 = vmatprep.subr.mxu0 0.0
    %179 = vmatpush1.msra.mxu0 0.0
    %180 = vmatprep.subr.mxu0 0.0
    %181 = vmatpush1.msra.mxu0 0.0
    %182 = vmatprep.subr.mxu0 0.0
    %183 = vmatpush1.msra.mxu0 0.0
    %184 = vmatprep.subr.mxu0 0.0
    %185 = vmatpush1.msra.mxu0 0.0
    %186 = vmatprep.subr.mxu0 0.0
    %187 = vmatpush1.msra.mxu0 0.0
    %188 = vmatprep.subr.mxu0 0.0
    %189 = vmatpush1.msra.mxu0 0.0
    %190 = vmatprep.subr.mxu0 0.0
    %191 = vmatpush1.msra.mxu0 0.0
    %192 = vmatprep.subr.mxu0 0.0
    %193 = vmatpush1.msra.mxu0 0.0
    %194 = vmatprep.subr.mxu0 0.0
    %195 = vmatpush1.msra.mxu0 0.0
    %196 = vmatprep.subr.mxu0 0.0
    %197 = vmatpush1.msra.mxu0 0.0
    %198 = vmatprep.subr.mxu0 0.0
    %199 = vmatpush1.msra.mxu0 0.0
    %200 = vmatprep.subr.mxu0 0.0
    %201 = vmatpush1.msra.mxu0 0.0
    %202 = vmatprep.subr.mxu0 0.0
    %203 = vmatpush1.msra.mxu0 0.0
    %204 = vmatprep.subr.mxu0 0.0
    %205 = vmatpush1.msra.mxu0 0.0
    %206 = vmatprep.subr.mxu0 0.0
    %207 = vmatpush1.msra.mxu0 0.0
    %208 = vmatprep.subr.mxu0 0.0
    %209 = vmatpush1.msra.mxu0 0.0
    %210 = vmatprep.subr.mxu0 0.0
    %211 = vmatpush1.msra.mxu0 0.0
    %212 = vmatprep.subr.mxu0 0.0
    %213 = vmatpush1.msra.mxu0 0.0
    %214 = vmatprep.subr.mxu0 0.0
    %215 = vmatpush1.msra.mxu0 0.0
    %216 = vmatprep.subr.mxu0 0.0
    %217 = vmatpush1.msra.mxu0 0.0
    %218 = vmatprep.subr.mxu0 0.0
    %219 = vmatpush1.msra.mxu0 0.0
    %220 = vmatprep.subr.mxu0 0.0
    %221 = vmatpush1.msra.mxu0 0.0
    %222 = vmatprep.subr.mxu0 0.0
    %223 = vmatpush1.msra.mxu0 0.0
    %224 = vmatprep.subr.mxu0 0.0
    %225 = vmatpush1.msra.mxu0 0.0
    %226 = vmatprep.subr.mxu0 0.0
    %227 = vmatpush1.msra.mxu0 0.0
    %228 = vmatprep.subr.mxu0 0.0
    %229 = vmatpush1.msra.mxu0 0.0
    %230 = vmatprep.subr.mxu0 0.0
    %231 = vmatpush1.msra.mxu0 0.0
    %232 = vmatprep.subr.mxu0 0.0
    %233 = vmatpush1.msra.mxu0 0.0
    %234 = vmatprep.subr.mxu0 0.0
    %235 = vmatpush1.msra.mxu0 0.0
    %236 = vmatprep.subr.mxu0 0.0
    %237 = vmatpush1.msra.mxu0 0.0
    %238 = vmatprep.subr.mxu0 0.0
    %239 = vmatpush1.msra.mxu0 0.0
    %240 = vmatprep.mubr.f32.mxu0 0.0
    %241 = vmatmul.mubr.f32.gmra.mrb[0].mxu0 %v94
    %v242 = vpop.f32.mrb[0].mxu0
    %v243 = vadd.f32 %v79, %v242
    %v244 = vpop.f32.mrb[0].mxu0
    %v245 = vadd.f32 %v83, %v244
    %246 = vdwg.mxu0
    %247 = vst [vmem:[#allocation2] sm:$0xff] %v172
    %248 = vst [vmem:[#allocation2 + $0x8] sm:$0xff] %v174
    %249 = vst [vmem:[#allocation2 + $0x10] sm:$0xff] %v243
    %250 = vst [vmem:[#allocation2 + $0x18] sm:$0xff] %v245
    %v251 = vld [vmem:[#allocation2] ss:$8 sm:$0xf]
    %v252 = vld [vmem:[#allocation7] sm:$0xff]
    %v253 = vld [vmem:[#allocation7 + $0x8] sm:$0xff]
    %v254 = vld [vmem:[#allocation7 + $0x10] sm:$0xff]
    %v255 = vld [vmem:[#allocation7 + $0x18] sm:$0xff]
    %v256 = vld [vmem:[#allocation7 + $0x20] sm:$0xff]
    %v257 = vld [vmem:[#allocation7 + $0x28] sm:$0xff]
    %v258 = vld [vmem:[#allocation7 + $0x30] sm:$0xff]
    %v259 = vld [vmem:[#allocation7 + $0x38] sm:$0xff]
    %v260 = vld [vmem:[#allocation7 + $0x40] sm:$0xff]
    %v261 = vld [vmem:[#allocation7 + $0x48] sm:$0xff]
    %v262 = vld [vmem:[#allocation7 + $0x50] sm:$0xff]
    %v263 = vld [vmem:[#allocation7 + $0x58] sm:$0xff]
    %v264 = vld [vmem:[#allocation7 + $0x60] sm:$0xff]
    %v265 = vld [vmem:[#allocation7 + $0x68] sm:$0xff]
    %v266 = vld [vmem:[#allocation7 + $0x70] sm:$0xff]
    %v267 = vld [vmem:[#allocation7 + $0x78] sm:$0xff]
    %v268 = vld [vmem:[#allocation7 + $0x80] sm:$0xff]
    %v269 = vld [vmem:[#allocation7 + $0x88] sm:$0xff]
    %v270 = vld [vmem:[#allocation7 + $0x90] sm:$0xff]
    %v271 = vld [vmem:[#allocation7 + $0x98] sm:$0xff]
    %v272 = vld [vmem:[#allocation7 + $0xa0] sm:$0xff]
    %v273 = vld [vmem:[#allocation7 + $0xa8] sm:$0xff]
    %v274 = vld [vmem:[#allocation7 + $0xb0] sm:$0xff]
    %v275 = vld [vmem:[#allocation7 + $0xb8] sm:$0xff]
    %v276 = vld [vmem:[#allocation7 + $0xc0] sm:$0xff]
    %v277 = vld [vmem:[#allocation7 + $0xc8] sm:$0xff]
    %v278 = vld [vmem:[#allocation7 + $0xd0] sm:$0xff]
    %v279 = vld [vmem:[#allocation7 + $0xd8] sm:$0xff]
    %v280 = vld [vmem:[#allocation7 + $0xe0] sm:$0xff]
    %v281 = vld [vmem:[#allocation7 + $0xe8] sm:$0xff]
    %v282 = vld [vmem:[#allocation7 + $0xf0] sm:$0xff]
    %v283 = vld [vmem:[#allocation7 + $0xf8] sm:$0xff]
    %v284 = vld [vmem:[#allocation7 + $0x100] sm:$0xff]
    %v285 = vld [vmem:[#allocation7 + $0x108] sm:$0xff]
    %v286 = vld [vmem:[#allocation7 + $0x110] sm:$0xff]
    %v287 = vld [vmem:[#allocation7 + $0x118] sm:$0xff]
    %v288 = vld [vmem:[#allocation7 + $0x120] sm:$0xff]
    %v289 = vld [vmem:[#allocation7 + $0x128] sm:$0xff]
    %v290 = vld [vmem:[#allocation7 + $0x130] sm:$0xff]
    %v291 = vld [vmem:[#allocation7 + $0x138] sm:$0xff]
    %v292 = vld [vmem:[#allocation7 + $0x140] sm:$0xff]
    %v293 = vld [vmem:[#allocation7 + $0x148] sm:$0xff]
    %v294 = vld [vmem:[#allocation7 + $0x150] sm:$0xff]
    %v295 = vld [vmem:[#allocation7 + $0x158] sm:$0xff]
    %v296 = vld [vmem:[#allocation7 + $0x160] sm:$0xff]
    %v297 = vld [vmem:[#allocation7 + $0x168] sm:$0xff]
    %v298 = vld [vmem:[#allocation7 + $0x170] sm:$0xff]
    %v299 = vld [vmem:[#allocation7 + $0x178] sm:$0xff]
    %v300 = vld [vmem:[#allocation7 + $0x180] sm:$0xff]
    %v301 = vld [vmem:[#allocation7 + $0x188] sm:$0xff]
    %v302 = vld [vmem:[#allocation7 + $0x190] sm:$0xff]
    %v303 = vld [vmem:[#allocation7 + $0x198] sm:$0xff]
    %v304 = vld [vmem:[#allocation7 + $0x1a0] sm:$0xff]
    %v305 = vld [vmem:[#allocation7 + $0x1a8] sm:$0xff]
    %v306 = vld [vmem:[#allocation7 + $0x1b0] sm:$0xff]
    %v307 = vld [vmem:[#allocation7 + $0x1b8] sm:$0xff]
    %v308 = vld [vmem:[#allocation7 + $0x1c0] sm:$0xff]
    %v309 = vld [vmem:[#allocation7 + $0x1c8] sm:$0xff]
    %v310 = vld [vmem:[#allocation7 + $0x1d0] sm:$0xff]
    %v311 = vld [vmem:[#allocation7 + $0x1d8] sm:$0xff]
    %v312 = vld [vmem:[#allocation7 + $0x1e0] sm:$0xff]
    %v313 = vld [vmem:[#allocation7 + $0x1e8] sm:$0xff]
    %v314 = vld [vmem:[#allocation7 + $0x1f0] sm:$0xff]
    %v315 = vld [vmem:[#allocation7 + $0x1f8] sm:$0xff]
    %316 = vmatprep.subr.mxu0 %v253
    %317 = vmatpush1.msra.mxu0 %v252
    %318 = vmatprep.subr.mxu0 %v257
    %319 = vmatpush1.msra.mxu0 %v256
    %320 = vmatprep.subr.mxu0 %v261
    %321 = vmatpush1.msra.mxu0 %v260
    %322 = vmatprep.subr.mxu0 %v265
    %323 = vmatpush1.msra.mxu0 %v264
    %324 = vmatprep.subr.mxu0 %v269
    %325 = vmatpush1.msra.mxu0 %v268
    %326 = vmatprep.subr.mxu0 %v273
    %327 = vmatpush1.msra.mxu0 %v272
    %328 = vmatprep.subr.mxu0 %v277
    %329 = vmatpush1.msra.mxu0 %v276
    %330 = vmatprep.subr.mxu0 %v281
    %331 = vmatpush1.msra.mxu0 %v280
    %332 = vmatprep.subr.mxu0 %v285
    %333 = vmatpush1.msra.mxu0 %v284
    %334 = vmatprep.subr.mxu0 %v289
    %335 = vmatpush1.msra.mxu0 %v288
    %336 = vmatprep.subr.mxu0 %v293
    %337 = vmatpush1.msra.mxu0 %v292
    %338 = vmatprep.subr.mxu0 %v297
    %339 = vmatpush1.msra.mxu0 %v296
    %340 = vmatprep.subr.mxu0 %v301
    %341 = vmatpush1.msra.mxu0 %v300
    %342 = vmatprep.subr.mxu0 %v305
    %343 = vmatpush1.msra.mxu0 %v304
    %344 = vmatprep.subr.mxu0 %v309
    %345 = vmatpush1.msra.mxu0 %v308
    %346 = vmatprep.subr.mxu0 %v313
    %347 = vmatpush1.msra.mxu0 %v312
    %348 = vmatprep.subr.mxu0 0.0
    %349 = vmatpush1.msra.mxu0 0.0
    %350 = vmatprep.subr.mxu0 0.0
    %351 = vmatpush1.msra.mxu0 0.0
    %352 = vmatprep.subr.mxu0 0.0
    %353 = vmatpush1.msra.mxu0 0.0
    %354 = vmatprep.subr.mxu0 0.0
    %355 = vmatpush1.msra.mxu0 0.0
    %356 = vmatprep.subr.mxu0 0.0
    %357 = vmatpush1.msra.mxu0 0.0
    %358 = vmatprep.subr.mxu0 0.0
    %359 = vmatpush1.msra.mxu0 0.0
    %360 = vmatprep.subr.mxu0 0.0
    %361 = vmatpush1.msra.mxu0 0.0
    %362 = vmatprep.subr.mxu0 0.0
    %363 = vmatpush1.msra.mxu0 0.0
    %364 = vmatprep.subr.mxu0 0.0
    %365 = vmatpush1.msra.mxu0 0.0
    %366 = vmatprep.subr.mxu0 0.0
    %367 = vmatpush1.msra.mxu0 0.0
    %368 = vmatprep.subr.mxu0 0.0
    %369 = vmatpush1.msra.mxu0 0.0
    %370 = vmatprep.subr.mxu0 0.0
    %371 = vmatpush1.msra.mxu0 0.0
    %372 = vmatprep.subr.mxu0 0.0
    %373 = vmatpush1.msra.mxu0 0.0
    %374 = vmatprep.subr.mxu0 0.0
    %375 = vmatpush1.msra.mxu0 0.0
    %376 = vmatprep.subr.mxu0 0.0
    %377 = vmatpush1.msra.mxu0 0.0
    %378 = vmatprep.subr.mxu0 0.0
    %379 = vmatpush1.msra.mxu0 0.0
    %380 = vmatprep.mubr.f32.mxu0 0.0
    %381 = vmatmul.mubr.f32.gmra.mrb[0].mxu0 0.0
    %v382 = vpop.f32.mrb[0].mxu0
    %v383 = vadd.f32 0.0, %v382
    %v384 = vpop.f32.mrb[0].mxu0
    %v385 = vadd.f32 0.0, %v384
    %386 = vdwg.mxu0
    %387 = vmatprep.subr.mxu0 %v255
    %388 = vmatpush1.msra.mxu0 %v254
    %389 = vmatprep.subr.mxu0 %v259
    %390 = vmatpush1.msra.mxu0 %v258
    %391 = vmatprep.subr.mxu0 %v263
    %392 = vmatpush1.msra.mxu0 %v262
    %393 = vmatprep.subr.mxu0 %v267
    %394 = vmatpush1.msra.mxu0 %v266
    %395 = vmatprep.subr.mxu0 %v271
    %396 = vmatpush1.msra.mxu0 %v270
    %397 = vmatprep.subr.mxu0 %v275
    %398 = vmatpush1.msra.mxu0 %v274
    %399 = vmatprep.subr.mxu0 %v279
    %400 = vmatpush1.msra.mxu0 %v278
    %401 = vmatprep.subr.mxu0 %v283
    %402 = vmatpush1.msra.mxu0 %v282
    %403 = vmatprep.subr.mxu0 %v287
    %404 = vmatpush1.msra.mxu0 %v286
    %405 = vmatprep.subr.mxu0 %v291
    %406 = vmatpush1.msra.mxu0 %v290
    %407 = vmatprep.subr.mxu0 %v295
    %408 = vmatpush1.msra.mxu0 %v294
    %409 = vmatprep.subr.mxu0 %v299
    %410 = vmatpush1.msra.mxu0 %v298
    %411 = vmatprep.subr.mxu0 %v303
    %412 = vmatpush1.msra.mxu0 %v302
    %413 = vmatprep.subr.mxu0 %v307
    %414 = vmatpush1.msra.mxu0 %v306
    %415 = vmatprep.subr.mxu0 %v311
    %416 = vmatpush1.msra.mxu0 %v310
    %417 = vmatprep.subr.mxu0 %v315
    %418 = vmatpush1.msra.mxu0 %v314
    %419 = vmatprep.subr.mxu0 0.0
    %420 = vmatpush1.msra.mxu0 0.0
    %421 = vmatprep.subr.mxu0 0.0
    %422 = vmatpush1.msra.mxu0 0.0
    %423 = vmatprep.subr.mxu0 0.0
    %424 = vmatpush1.msra.mxu0 0.0
    %425 = vmatprep.subr.mxu0 0.0
    %426 = vmatpush1.msra.mxu0 0.0
    %427 = vmatprep.subr.mxu0 0.0
    %428 = vmatpush1.msra.mxu0 0.0
    %429 = vmatprep.subr.mxu0 0.0
    %430 = vmatpush1.msra.mxu0 0.0
    %431 = vmatprep.subr.mxu0 0.0
    %432 = vmatpush1.msra.mxu0 0.0
    %433 = vmatprep.subr.mxu0 0.0
    %434 = vmatpush1.msra.mxu0 0.0
    %435 = vmatprep.subr.mxu0 0.0
    %436 = vmatpush1.msra.mxu0 0.0
    %437 = vmatprep.subr.mxu0 0.0
    %438 = vmatpush1.msra.mxu0 0.0
    %439 = vmatprep.subr.mxu0 0.0
    %440 = vmatpush1.msra.mxu0 0.0
    %441 = vmatprep.subr.mxu0 0.0
    %442 = vmatpush1.msra.mxu0 0.0
    %443 = vmatprep.subr.mxu0 0.0
    %444 = vmatpush1.msra.mxu0 0.0
    %445 = vmatprep.subr.mxu0 0.0
    %446 = vmatpush1.msra.mxu0 0.0
    %447 = vmatprep.subr.mxu0 0.0
    %448 = vmatpush1.msra.mxu0 0.0
    %449 = vmatprep.subr.mxu0 0.0
    %450 = vmatpush1.msra.mxu0 0.0
    %451 = vmatprep.mubr.f32.mxu0 0.0
    %452 = vmatmul.mubr.f32.gmra.mrb[0].mxu0 0.0
    %v453 = vpop.f32.mrb[0].mxu0
    %v454 = vadd.f32 0.0, %v453
    %v455 = vpop.f32.mrb[0].mxu0
    %v456 = vadd.f32 0.0, %v455
    %457 = vdwg.mxu0
    %v462 = vcombine.low %v383, %v385
    %v463 = vcombine.low %v454, %v456
    %v465 = vunpack.c.l.s4 1966171168
    %v466 = vunpack.c.0.s8 %v465
    %v467 = vlaneseq
    %v468 = vshrl.u32 %v467, 7
    %v469 = vsub.s32 %v466, %v468
    %v470 = vrot.slane %v462, %v469
    %v472 = vunpack.c.l.s4 1966171168
    %v473 = vunpack.c.0.s8 %v472
    %v474 = vlaneseq
    %v475 = vshrl.u32 %v474, 7
    %v476 = vsub.s32 %v473, %v475
    %v477 = vrot.slane %v463, %v476
    %v478 = vcombine.low %v470, %v477
    %v480 = vunpack.c.l.s4 1966171168
    %v481 = vunpack.c.0.s8 %v480
    %v482 = vlaneseq
    %v483 = vshrl.u32 %v482, 7
    %v484 = vsub.s32 %v481, %v483
    %v485 = vrot.slane %v478, %v484
    %v487 = vadd.f32 %v251, %v485
    %v488 = vxor.u32 %v487, 2147483648
    %v489 = vmul.f32 %v488, 1.442695
    %v490 = vpow.pop %v489
    %v491 = vadd.f32 %v490, 1.0
    %v492 = vrcp.pop %v491
    %v493 = vmul.f32 1.0, %v492
    %v495 = vrot.slane %v487, 3
    %v497 = vtanh.pop %v495
    %v499 = vrot.slane %v493, 1
    %v501 = vmul.f32 %v499, 0.0
    %v502 = vmul.f32 %v493, %v497
    %v503 = vadd.f32 %v501, %v502
    %v504 = vtanh.pop %v503
    %v505 = vrot.slane %v493, 2
    %v507 = vmul.f32 %v505, %v504
    %508 = vst [vmem:[#allocation3] sm:$0x1] %v507
    %s509 = scalar_lea.vmem [#allocation2], 1
    %v510 = vld [vmem:[%s509] ss:$8 sm:$0xf]
    %v511 = vld [vmem:[#allocation7] sm:$0xff]
    %v512 = vld [vmem:[#allocation7 + $0x8] sm:$0xff]
    %v513 = vld [vmem:[#allocation7 + $0x10] sm:$0xff]
    %v514 = vld [vmem:[#allocation7 + $0x18] sm:$0xff]
    %v515 = vld [vmem:[#allocation7 + $0x20] sm:$0xff]
    %v516 = vld [vmem:[#allocation7 + $0x28] sm:$0xff]
    %v517 = vld [vmem:[#allocation7 + $0x30] sm:$0xff]
    %v518 = vld [vmem:[#allocation7 + $0x38] sm:$0xff]
    %v519 = vld [vmem:[#allocation7 + $0x40] sm:$0xff]
    %v520 = vld [vmem:[#allocation7 + $0x48] sm:$0xff]
    %v521 = vld [vmem:[#allocation7 + $0x50] sm:$0xff]
    %v522 = vld [vmem:[#allocation7 + $0x58] sm:$0xff]
    %v523 = vld [vmem:[#allocation7 + $0x60] sm:$0xff]
    %v524 = vld [vmem:[#allocation7 + $0x68] sm:$0xff]
    %v525 = vld [vmem:[#allocation7 + $0x70] sm:$0xff]
    %v526 = vld [vmem:[#allocation7 + $0x78] sm:$0xff]
    %v527 = vld [vmem:[#allocation7 + $0x80] sm:$0xff]
    %v528 = vld [vmem:[#allocation7 + $0x88] sm:$0xff]
    %v529 = vld [vmem:[#allocation7 + $0x90] sm:$0xff]
    %v530 = vld [vmem:[#allocation7 + $0x98] sm:$0xff]
    %v531 = vld [vmem:[#allocation7 + $0xa0] sm:$0xff]
    %v532 = vld [vmem:[#allocation7 + $0xa8] sm:$0xff]
    %v533 = vld [vmem:[#allocation7 + $0xb0] sm:$0xff]
    %v534 = vld [vmem:[#allocation7 + $0xb8] sm:$0xff]
    %v535 = vld [vmem:[#allocation7 + $0xc0] sm:$0xff]
    %v536 = vld [vmem:[#allocation7 + $0xc8] sm:$0xff]
    %v537 = vld [vmem:[#allocation7 + $0xd0] sm:$0xff]
    %v538 = vld [vmem:[#allocation7 + $0xd8] sm:$0xff]
    %v539 = vld [vmem:[#allocation7 + $0xe0] sm:$0xff]
    %v540 = vld [vmem:[#allocation7 + $0xe8] sm:$0xff]
    %v541 = vld [vmem:[#allocation7 + $0xf0] sm:$0xff]
    %v542 = vld [vmem:[#allocation7 + $0xf8] sm:$0xff]
    %v543 = vld [vmem:[#allocation7 + $0x100] sm:$0xff]
    %v544 = vld [vmem:[#allocation7 + $0x108] sm:$0xff]
    %v545 = vld [vmem:[#allocation7 + $0x110] sm:$0xff]
    %v546 = vld [vmem:[#allocation7 + $0x118] sm:$0xff]
    %v547 = vld [vmem:[#allocation7 + $0x120] sm:$0xff]
    %v548 = vld [vmem:[#allocation7 + $0x128] sm:$0xff]
    %v549 = vld [vmem:[#allocation7 + $0x130] sm:$0xff]
    %v550 = vld [vmem:[#allocation7 + $0x138] sm:$0xff]
    %v551 = vld [vmem:[#allocation7 + $0x140] sm:$0xff]
    %v552 = vld [vmem:[#allocation7 + $0x148] sm:$0xff]
    %v553 = vld [vmem:[#allocation7 + $0x150] sm:$0xff]
    %v554 = vld [vmem:[#allocation7 + $0x158] sm:$0xff]
    %v555 = vld [vmem:[#allocation7 + $0x160] sm:$0xff]
    %v556 = vld [vmem:[#allocation7 + $0x168] sm:$0xff]
    %v557 = vld [vmem:[#allocation7 + $0x170] sm:$0xff]
    %v558 = vld [vmem:[#allocation7 + $0x178] sm:$0xff]
    %v559 = vld [vmem:[#allocation7 + $0x180] sm:$0xff]
    %v560 = vld [vmem:[#allocation7 + $0x188] sm:$0xff]
    %v561 = vld [vmem:[#allocation7 + $0x190] sm:$0xff]
    %v562 = vld [vmem:[#allocation7 + $0x198] sm:$0xff]
    %v563 = vld [vmem:[#allocation7 + $0x1a0] sm:$0xff]
    %v564 = vld [vmem:[#allocation7 + $0x1a8] sm:$0xff]
    %v565 = vld [vmem:[#allocation7 + $0x1b0] sm:$0xff]
    %v566 = vld [vmem:[#allocation7 + $0x1b8] sm:$0xff]
    %v567 = vld [vmem:[#allocation7 + $0x1c0] sm:$0xff]
    %v568 = vld [vmem:[#allocation7 + $0x1c8] sm:$0xff]
    %v569 = vld [vmem:[#allocation7 + $0x1d0] sm:$0xff]
    %v570 = vld [vmem:[#allocation7 + $0x1d8] sm:$0xff]
    %v571 = vld [vmem:[#allocation7 + $0x1e0] sm:$0xff]
    %v572 = vld [vmem:[#allocation7 + $0x1e8] sm:$0xff]
    %v573 = vld [vmem:[#allocation7 + $0x1f0] sm:$0xff]
    %v574 = vld [vmem:[#allocation7 + $0x1f8] sm:$0xff]
    %575 = vmatprep.subr.mxu0 %v512
    %576 = vmatpush1.msra.mxu0 %v511
    %577 = vmatprep.subr.mxu0 %v516
    %578 = vmatpush1.msra.mxu0 %v515
    %579 = vmatprep.subr.mxu0 %v520
    %580 = vmatpush1.msra.mxu0 %v519
    %581 = vmatprep.subr.mxu0 %v524
    %582 = vmatpush1.msra.mxu0 %v523
    %583 = vmatprep.subr.mxu0 %v528
    %584 = vmatpush1.msra.mxu0 %v527
    %585 = vmatprep.subr.mxu0 %v532
    %586 = vmatpush1.msra.mxu0 %v531
    %587 = vmatprep.subr.mxu0 %v536
    %588 = vmatpush1.msra.mxu0 %v535
    %589 = vmatprep.subr.mxu0 %v540
    %590 = vmatpush1.msra.mxu0 %v539
    %591 = vmatprep.subr.mxu0 %v544
    %592 = vmatpush1.msra.mxu0 %v543
    %593 = vmatprep.subr.mxu0 %v548
    %594 = vmatpush1.msra.mxu0 %v547
    %595 = vmatprep.subr.mxu0 %v552
    %596 = vmatpush1.msra.mxu0 %v551
    %597 = vmatprep.subr.mxu0 %v556
    %598 = vmatpush1.msra.mxu0 %v555
    %599 = vmatprep.subr.mxu0 %v560
    %600 = vmatpush1.msra.mxu0 %v559
    %601 = vmatprep.subr.mxu0 %v564
    %602 = vmatpush1.msra.mxu0 %v563
    %603 = vmatprep.subr.mxu0 %v568
    %604 = vmatpush1.msra.mxu0 %v567
    %605 = vmatprep.subr.mxu0 %v572
    %606 = vmatpush1.msra.mxu0 %v571
    %607 = vmatprep.subr.mxu0 0.0
    %608 = vmatpush1.msra.mxu0 0.0
    %609 = vmatprep.subr.mxu0 0.0
    %610 = vmatpush1.msra.mxu0 0.0
    %611 = vmatprep.subr.mxu0 0.0
    %612 = vmatpush1.msra.mxu0 0.0
    %613 = vmatprep.subr.mxu0 0.0
    %614 = vmatpush1.msra.mxu0 0.0
    %615 = vmatprep.subr.mxu0 0.0
    %616 = vmatpush1.msra.mxu0 0.0
    %617 = vmatprep.subr.mxu0 0.0
    %618 = vmatpush1.msra.mxu0 0.0
    %619 = vmatprep.subr.mxu0 0.0
    %620 = vmatpush1.msra.mxu0 0.0
    %621 = vmatprep.subr.mxu0 0.0
    %622 = vmatpush1.msra.mxu0 0.0
    %623 = vmatprep.subr.mxu0 0.0
    %624 = vmatpush1.msra.mxu0 0.0
    %625 = vmatprep.subr.mxu0 0.0
    %626 = vmatpush1.msra.mxu0 0.0
    %627 = vmatprep.subr.mxu0 0.0
    %628 = vmatpush1.msra.mxu0 0.0
    %629 = vmatprep.subr.mxu0 0.0
    %630 = vmatpush1.msra.mxu0 0.0
    %631 = vmatprep.subr.mxu0 0.0
    %632 = vmatpush1.msra.mxu0 0.0
    %633 = vmatprep.subr.mxu0 0.0
    %634 = vmatpush1.msra.mxu0 0.0
    %635 = vmatprep.subr.mxu0 0.0
    %636 = vmatpush1.msra.mxu0 0.0
    %637 = vmatprep.subr.mxu0 0.0
    %638 = vmatpush1.msra.mxu0 0.0
    %639 = vmatprep.mubr.f32.mxu0 0.0
    %640 = vmatmul.mubr.f32.gmra.mrb[0].mxu0 %v507
    %v641 = vpop.f32.mrb[0].mxu0
    %v642 = vadd.f32 0.0, %v641
    %v643 = vpop.f32.mrb[0].mxu0
    %v644 = vadd.f32 0.0, %v643
    %645 = vdwg.mxu0
    %646 = vmatprep.subr.mxu0 %v514
    %647 = vmatpush1.msra.mxu0 %v513
    %648 = vmatprep.subr.mxu0 %v518
    %649 = vmatpush1.msra.mxu0 %v517
    %650 = vmatprep.subr.mxu0 %v522
    %651 = vmatpush1.msra.mxu0 %v521
    %652 = vmatprep.subr.mxu0 %v526
    %653 = vmatpush1.msra.mxu0 %v525
    %654 = vmatprep.subr.mxu0 %v530
    %655 = vmatpush1.msra.mxu0 %v529
    %656 = vmatprep.subr.mxu0 %v534
    %657 = vmatpush1.msra.mxu0 %v533
    %658 = vmatprep.subr.mxu0 %v538
    %659 = vmatpush1.msra.mxu0 %v537
    %660 = vmatprep.subr.mxu0 %v542
    %661 = vmatpush1.msra.mxu0 %v541
    %662 = vmatprep.subr.mxu0 %v546
    %663 = vmatpush1.msra.mxu0 %v545
    %664 = vmatprep.subr.mxu0 %v550
    %665 = vmatpush1.msra.mxu0 %v549
    %666 = vmatprep.subr.mxu0 %v554
    %667 = vmatpush1.msra.mxu0 %v553
    %668 = vmatprep.subr.mxu0 %v558
    %669 = vmatpush1.msra.mxu0 %v557
    %670 = vmatprep.subr.mxu0 %v562
    %671 = vmatpush1.msra.mxu0 %v561
    %672 = vmatprep.subr.mxu0 %v566
    %673 = vmatpush1.msra.mxu0 %v565
    %674 = vmatprep.subr.mxu0 %v570
    %675 = vmatpush1.msra.mxu0 %v569
    %676 = vmatprep.subr.mxu0 %v574
    %677 = vmatpush1.msra.mxu0 %v573
    %678 = vmatprep.subr.mxu0 0.0
    %679 = vmatpush1.msra.mxu0 0.0
    %680 = vmatprep.subr.mxu0 0.0
    %681 = vmatpush1.msra.mxu0 0.0
    %682 = vmatprep.subr.mxu0 0.0
    %683 = vmatpush1.msra.mxu0 0.0
    %684 = vmatprep.subr.mxu0 0.0
    %685 = vmatpush1.msra.mxu0 0.0
    %686 = vmatprep.subr.mxu0 0.0
    %687 = vmatpush1.msra.mxu0 0.0
    %688 = vmatprep.subr.mxu0 0.0
    %689 = vmatpush1.msra.mxu0 0.0
    %690 = vmatprep.subr.mxu0 0.0
    %691 = vmatpush1.msra.mxu0 0.0
    %692 = vmatprep.subr.mxu0 0.0
    %693 = vmatpush1.msra.mxu0 0.0
    %694 = vmatprep.subr.mxu0 0.0
    %695 = vmatpush1.msra.mxu0 0.0
    %696 = vmatprep.subr.mxu0 0.0
    %697 = vmatpush1.msra.mxu0 0.0
    %698 = vmatprep.subr.mxu0 0.0
    %699 = vmatpush1.msra.mxu0 0.0
    %700 = vmatprep.subr.mxu0 0.0
    %701 = vmatpush1.msra.mxu0 0.0
    %702 = vmatprep.subr.mxu0 0.0
    %703 = vmatpush1.msra.mxu0 0.0
    %704 = vmatprep.subr.mxu0 0.0
    %705 = vmatpush1.msra.mxu0 0.0
    %706 = vmatprep.subr.mxu0 0.0
    %707 = vmatpush1.msra.mxu0 0.0
    %708 = vmatprep.subr.mxu0 0.0
    %709 = vmatpush1.msra.mxu0 0.0
    %710 = vmatprep.mubr.f32.mxu0 0.0
    %711 = vmatmul.mubr.f32.gmra.mrb[0].mxu0 %v507
    %v712 = vpop.f32.mrb[0].mxu0
    %v713 = vadd.f32 0.0, %v712
    %v714 = vpop.f32.mrb[0].mxu0
    %v715 = vadd.f32 0.0, %v714
    %716 = vdwg.mxu0
    %v721 = vcombine.low %v642, %v644
    %v722 = vcombine.low %v713, %v715
    %v724 = vunpack.c.l.s4 1966171168
    %v725 = vunpack.c.0.s8 %v724
    %v726 = vlaneseq
    %v727 = vshrl.u32 %v726, 7
    %v728 = vsub.s32 %v725, %v727
    %v729 = vrot.slane %v721, %v728
    %v731 = vunpack.c.l.s4 1966171168
    %v732 = vunpack.c.0.s8 %v731
    %v733 = vlaneseq
    %v734 = vshrl.u32 %v733, 7
    %v735 = vsub.s32 %v732, %v734
    %v736 = vrot.slane %v722, %v735
    %v737 = vcombine.low %v729, %v736
    %v739 = vunpack.c.l.s4 1966171168
    %v740 = vunpack.c.0.s8 %v739
    %v741 = vlaneseq
    %v742 = vshrl.u32 %v741, 7
    %v743 = vsub.s32 %v740, %v742
    %v744 = vrot.slane %v737, %v743
    %v746 = vadd.f32 %v510, %v744
    %v747 = vxor.u32 %v746, 2147483648
    %v748 = vmul.f32 %v747, 1.442695
    %v749 = vpow.pop %v748
    %v750 = vadd.f32 %v749, 1.0
    %v751 = vrcp.pop %v750
    %v752 = vmul.f32 1.0, %v751
    %v754 = vrot.slane %v746, 3
    %v756 = vtanh.pop %v754
    %v758 = vrot.slane %v752, 1
    %v760 = vmul.f32 %v758, %v503
    %v761 = vmul.f32 %v752, %v756
    %v762 = vadd.f32 %v760, %v761
    %v763 = vtanh.pop %v762
    %v764 = vrot.slane %v752, 2
    %v766 = vmul.f32 %v764, %v763
    %767 = vst [vmem:[#allocation3 + $0x1] sm:$0x1] %v766
    %s768 = scalar_lea.vmem [#allocation2], 2
    %v769 = vld [vmem:[%s768] ss:$8 sm:$0xf]
    %v770 = vld [vmem:[#allocation7] sm:$0xff]
    %v771 = vld [vmem:[#allocation7 + $0x8] sm:$0xff]
    %v772 = vld [vmem:[#allocation7 + $0x10] sm:$0xff]
    %v773 = vld [vmem:[#allocation7 + $0x18] sm:$0xff]
    %v774 = vld [vmem:[#allocation7 + $0x20] sm:$0xff]
    %v775 = vld [vmem:[#allocation7 + $0x28] sm:$0xff]
    %v776 = vld [vmem:[#allocation7 + $0x30] sm:$0xff]
    %v777 = vld [vmem:[#allocation7 + $0x38] sm:$0xff]
    %v778 = vld [vmem:[#allocation7 + $0x40] sm:$0xff]
    %v779 = vld [vmem:[#allocation7 + $0x48] sm:$0xff]
    %v780 = vld [vmem:[#allocation7 + $0x50] sm:$0xff]
    %v781 = vld [vmem:[#allocation7 + $0x58] sm:$0xff]
    %v782 = vld [vmem:[#allocation7 + $0x60] sm:$0xff]
    %v783 = vld [vmem:[#allocation7 + $0x68] sm:$0xff]
    %v784 = vld [vmem:[#allocation7 + $0x70] sm:$0xff]
    %v785 = vld [vmem:[#allocation7 + $0x78] sm:$0xff]
    %v786 = vld [vmem:[#allocation7 + $0x80] sm:$0xff]
    %v787 = vld [vmem:[#allocation7 + $0x88] sm:$0xff]
    %v788 = vld [vmem:[#allocation7 + $0x90] sm:$0xff]
    %v789 = vld [vmem:[#allocation7 + $0x98] sm:$0xff]
    %v790 = vld [vmem:[#allocation7 + $0xa0] sm:$0xff]
    %v791 = vld [vmem:[#allocation7 + $0xa8] sm:$0xff]
    %v792 = vld [vmem:[#allocation7 + $0xb0] sm:$0xff]
    %v793 = vld [vmem:[#allocation7 + $0xb8] sm:$0xff]
    %v794 = vld [vmem:[#allocation7 + $0xc0] sm:$0xff]
    %v795 = vld [vmem:[#allocation7 + $0xc8] sm:$0xff]
    %v796 = vld [vmem:[#allocation7 + $0xd0] sm:$0xff]
    %v797 = vld [vmem:[#allocation7 + $0xd8] sm:$0xff]
    %v798 = vld [vmem:[#allocation7 + $0xe0] sm:$0xff]
    %v799 = vld [vmem:[#allocation7 + $0xe8] sm:$0xff]
    %v800 = vld [vmem:[#allocation7 + $0xf0] sm:$0xff]
    %v801 = vld [vmem:[#allocation7 + $0xf8] sm:$0xff]
    %v802 = vld [vmem:[#allocation7 + $0x100] sm:$0xff]
    %v803 = vld [vmem:[#allocation7 + $0x108] sm:$0xff]
    %v804 = vld [vmem:[#allocation7 + $0x110] sm:$0xff]
    %v805 = vld [vmem:[#allocation7 + $0x118] sm:$0xff]
    %v806 = vld [vmem:[#allocation7 + $0x120] sm:$0xff]
    %v807 = vld [vmem:[#allocation7 + $0x128] sm:$0xff]
    %v808 = vld [vmem:[#allocation7 + $0x130] sm:$0xff]
    %v809 = vld [vmem:[#allocation7 + $0x138] sm:$0xff]
    %v810 = vld [vmem:[#allocation7 + $0x140] sm:$0xff]
    %v811 = vld [vmem:[#allocation7 + $0x148] sm:$0xff]
    %v812 = vld [vmem:[#allocation7 + $0x150] sm:$0xff]
    %v813 = vld [vmem:[#allocation7 + $0x158] sm:$0xff]
    %v814 = vld [vmem:[#allocation7 + $0x160] sm:$0xff]
    %v815 = vld [vmem:[#allocation7 + $0x168] sm:$0xff]
    %v816 = vld [vmem:[#allocation7 + $0x170] sm:$0xff]
    %v817 = vld [vmem:[#allocation7 + $0x178] sm:$0xff]
    %v818 = vld [vmem:[#allocation7 + $0x180] sm:$0xff]
    %v819 = vld [vmem:[#allocation7 + $0x188] sm:$0xff]
    %v820 = vld [vmem:[#allocation7 + $0x190] sm:$0xff]
    %v821 = vld [vmem:[#allocation7 + $0x198] sm:$0xff]
    %v822 = vld [vmem:[#allocation7 + $0x1a0] sm:$0xff]
    %v823 = vld [vmem:[#allocation7 + $0x1a8] sm:$0xff]
    %v824 = vld [vmem:[#allocation7 + $0x1b0] sm:$0xff]
    %v825 = vld [vmem:[#allocation7 + $0x1b8] sm:$0xff]
    %v826 = vld [vmem:[#allocation7 + $0x1c0] sm:$0xff]
    %v827 = vld [vmem:[#allocation7 + $0x1c8] sm:$0xff]
    %v828 = vld [vmem:[#allocation7 + $0x1d0] sm:$0xff]
    %v829 = vld [vmem:[#allocation7 + $0x1d8] sm:$0xff]
    %v830 = vld [vmem:[#allocation7 + $0x1e0] sm:$0xff]
    %v831 = vld [vmem:[#allocation7 + $0x1e8] sm:$0xff]
    %v832 = vld [vmem:[#allocation7 + $0x1f0] sm:$0xff]
    %v833 = vld [vmem:[#allocation7 + $0x1f8] sm:$0xff]
    %834 = vmatprep.subr.mxu0 %v771
    %835 = vmatpush1.msra.mxu0 %v770
    %836 = vmatprep.subr.mxu0 %v775
    %837 = vmatpush1.msra.mxu0 %v774
    %838 = vmatprep.subr.mxu0 %v779
    %839 = vmatpush1.msra.mxu0 %v778
    %840 = vmatprep.subr.mxu0 %v783
    %841 = vmatpush1.msra.mxu0 %v782
    %842 = vmatprep.subr.mxu0 %v787
    %843 = vmatpush1.msra.mxu0 %v786
    %844 = vmatprep.subr.mxu0 %v791
    %845 = vmatpush1.msra.mxu0 %v790
    %846 = vmatprep.subr.mxu0 %v795
    %847 = vmatpush1.msra.mxu0 %v794
    %848 = vmatprep.subr.mxu0 %v799
    %849 = vmatpush1.msra.mxu0 %v798
    %850 = vmatprep.subr.mxu0 %v803
    %851 = vmatpush1.msra.mxu0 %v802
    %852 = vmatprep.subr.mxu0 %v807
    %853 = vmatpush1.msra.mxu0 %v806
    %854 = vmatprep.subr.mxu0 %v811
    %855 = vmatpush1.msra.mxu0 %v810
    %856 = vmatprep.subr.mxu0 %v815
    %857 = vmatpush1.msra.mxu0 %v814
    %858 = vmatprep.subr.mxu0 %v819
    %859 = vmatpush1.msra.mxu0 %v818
    %860 = vmatprep.subr.mxu0 %v823
    %861 = vmatpush1.msra.mxu0 %v822
    %862 = vmatprep.subr.mxu0 %v827
    %863 = vmatpush1.msra.mxu0 %v826
    %864 = vmatprep.subr.mxu0 %v831
    %865 = vmatpush1.msra.mxu0 %v830
    %866 = vmatprep.subr.mxu0 0.0
    %867 = vmatpush1.msra.mxu0 0.0
    %868 = vmatprep.subr.mxu0 0.0
    %869 = vmatpush1.msra.mxu0 0.0
    %870 = vmatprep.subr.mxu0 0.0
    %871 = vmatpush1.msra.mxu0 0.0
    %872 = vmatprep.subr.mxu0 0.0
    %873 = vmatpush1.msra.mxu0 0.0
    %874 = vmatprep.subr.mxu0 0.0
    %875 = vmatpush1.msra.mxu0 0.0
    %876 = vmatprep.subr.mxu0 0.0
    %877 = vmatpush1.msra.mxu0 0.0
    %878 = vmatprep.subr.mxu0 0.0
    %879 = vmatpush1.msra.mxu0 0.0
    %880 = vmatprep.subr.mxu0 0.0
    %881 = vmatpush1.msra.mxu0 0.0
    %882 = vmatprep.subr.mxu0 0.0
    %883 = vmatpush1.msra.mxu0 0.0
    %884 = vmatprep.subr.mxu0 0.0
    %885 = vmatpush1.msra.mxu0 0.0
    %886 = vmatprep.subr.mxu0 0.0
    %887 = vmatpush1.msra.mxu0 0.0
    %888 = vmatprep.subr.mxu0 0.0
    %889 = vmatpush1.msra.mxu0 0.0
    %890 = vmatprep.subr.mxu0 0.0
    %891 = vmatpush1.msra.mxu0 0.0
    %892 = vmatprep.subr.mxu0 0.0
    %893 = vmatpush1.msra.mxu0 0.0
    %894 = vmatprep.subr.mxu0 0.0
    %895 = vmatpush1.msra.mxu0 0.0
    %896 = vmatprep.subr.mxu0 0.0
    %897 = vmatpush1.msra.mxu0 0.0
    %898 = vmatprep.mubr.f32.mxu0 0.0
    %899 = vmatmul.mubr.f32.gmra.mrb[0].mxu0 %v766
    %v900 = vpop.f32.mrb[0].mxu0
    %v901 = vadd.f32 0.0, %v900
    %v902 = vpop.f32.mrb[0].mxu0
    %v903 = vadd.f32 0.0, %v902
    %904 = vdwg.mxu0
    %905 = vmatprep.subr.mxu0 %v773
    %906 = vmatpush1.msra.mxu0 %v772
    %907 = vmatprep.subr.mxu0 %v777
    %908 = vmatpush1.msra.mxu0 %v776
    %909 = vmatprep.subr.mxu0 %v781
    %910 = vmatpush1.msra.mxu0 %v780
    %911 = vmatprep.subr.mxu0 %v785
    %912 = vmatpush1.msra.mxu0 %v784
    %913 = vmatprep.subr.mxu0 %v789
    %914 = vmatpush1.msra.mxu0 %v788
    %915 = vmatprep.subr.mxu0 %v793
    %916 = vmatpush1.msra.mxu0 %v792
    %917 = vmatprep.subr.mxu0 %v797
    %918 = vmatpush1.msra.mxu0 %v796
    %919 = vmatprep.subr.mxu0 %v801
    %920 = vmatpush1.msra.mxu0 %v800
    %921 = vmatprep.subr.mxu0 %v805
    %922 = vmatpush1.msra.mxu0 %v804
    %923 = vmatprep.subr.mxu0 %v809
    %924 = vmatpush1.msra.mxu0 %v808
    %925 = vmatprep.subr.mxu0 %v813
    %926 = vmatpush1.msra.mxu0 %v812
    %927 = vmatprep.subr.mxu0 %v817
    %928 = vmatpush1.msra.mxu0 %v816
    %929 = vmatprep.subr.mxu0 %v821
    %930 = vmatpush1.msra.mxu0 %v820
    %931 = vmatprep.subr.mxu0 %v825
    %932 = vmatpush1.msra.mxu0 %v824
    %933 = vmatprep.subr.mxu0 %v829
    %934 = vmatpush1.msra.mxu0 %v828
    %935 = vmatprep.subr.mxu0 %v833
    %936 = vmatpush1.msra.mxu0 %v832
    %937 = vmatprep.subr.mxu0 0.0
    %938 = vmatpush1.msra.mxu0 0.0
    %939 = vmatprep.subr.mxu0 0.0
    %940 = vmatpush1.msra.mxu0 0.0
    %941 = vmatprep.subr.mxu0 0.0
    %942 = vmatpush1.msra.mxu0 0.0
    %943 = vmatprep.subr.mxu0 0.0
    %944 = vmatpush1.msra.mxu0 0.0
    %945 = vmatprep.subr.mxu0 0.0
    %946 = vmatpush1.msra.mxu0 0.0
    %947 = vmatprep.subr.mxu0 0.0
    %948 = vmatpush1.msra.mxu0 0.0
    %949 = vmatprep.subr.mxu0 0.0
    %950 = vmatpush1.msra.mxu0 0.0
    %951 = vmatprep.subr.mxu0 0.0
    %952 = vmatpush1.msra.mxu0 0.0
    %953 = vmatprep.subr.mxu0 0.0
    %954 = vmatpush1.msra.mxu0 0.0
    %955 = vmatprep.subr.mxu0 0.0
    %956 = vmatpush1.msra.mxu0 0.0
    %957 = vmatprep.subr.mxu0 0.0
    %958 = vmatpush1.msra.mxu0 0.0
    %959 = vmatprep.subr.mxu0 0.0
    %960 = vmatpush1.msra.mxu0 0.0
    %961 = vmatprep.subr.mxu0 0.0
    %962 = vmatpush1.msra.mxu0 0.0
    %963 = vmatprep.subr.mxu0 0.0
    %964 = vmatpush1.msra.mxu0 0.0
    %965 = vmatprep.subr.mxu0 0.0
    %966 = vmatpush1.msra.mxu0 0.0
    %967 = vmatprep.subr.mxu0 0.0
    %968 = vmatpush1.msra.mxu0 0.0
    %969 = vmatprep.mubr.f32.mxu0 0.0
    %970 = vmatmul.mubr.f32.gmra.mrb[0].mxu0 %v766
    %v971 = vpop.f32.mrb[0].mxu0
    %v972 = vadd.f32 0.0, %v971
    %v973 = vpop.f32.mrb[0].mxu0
    %v974 = vadd.f32 0.0, %v973
    %975 = vdwg.mxu0
    %v980 = vcombine.low %v901, %v903
    %v981 = vcombine.low %v972, %v974
    %v983 = vunpack.c.l.s4 1966171168
    %v984 = vunpack.c.0.s8 %v983
    %v985 = vlaneseq
    %v986 = vshrl.u32 %v985, 7
    %v987 = vsub.s32 %v984, %v986
    %v988 = vrot.slane %v980, %v987
    %v990 = vunpack.c.l.s4 1966171168
    %v991 = vunpack.c.0.s8 %v990
    %v992 = vlaneseq
    %v993 = vshrl.u32 %v992, 7
    %v994 = vsub.s32 %v991, %v993
    %v995 = vrot.slane %v981, %v994
    %v996 = vcombine.low %v988, %v995
    %v998 = vunpack.c.l.s4 1966171168
    %v999 = vunpack.c.0.s8 %v998
    %v1000 = vlaneseq
    %v1001 = vshrl.u32 %v1000, 7
    %v1002 = vsub.s32 %v999, %v1001
    %v1003 = vrot.slane %v996, %v1002
    %v1005 = vadd.f32 %v769, %v1003
    %v1006 = vxor.u32 %v1005, 2147483648
    %v1007 = vmul.f32 %v1006, 1.442695
    %v1008 = vpow.pop %v1007
    %v1009 = vadd.f32 %v1008, 1.0
    %v1010 = vrcp.pop %v1009
    %v1011 = vmul.f32 1.0, %v1010
    %v1013 = vrot.slane %v1005, 3
    %v1015 = vtanh.pop %v1013
    %v1017 = vrot.slane %v1011, 1
    %v1019 = vmul.f32 %v1017, %v762
    %v1020 = vmul.f32 %v1011, %v1015
    %v1021 = vadd.f32 %v1019, %v1020
    %v1022 = vtanh.pop %v1021
    %v1023 = vrot.slane %v1011, 2
    %v1025 = vmul.f32 %v1023, %v1022
    %1026 = vst [vmem:[#allocation3 + $0x2] sm:$0x1] %v1025
    %s1027 = scalar_lea.vmem [#allocation2], 3
    %v1028 = vld [vmem:[%s1027] ss:$8 sm:$0xf]
    %v1029 = vld [vmem:[#allocation7] sm:$0xff]
    %v1030 = vld [vmem:[#allocation7 + $0x8] sm:$0xff]
    %v1031 = vld [vmem:[#allocation7 + $0x10] sm:$0xff]
    %v1032 = vld [vmem:[#allocation7 + $0x18] sm:$0xff]
    %v1033 = vld [vmem:[#allocation7 + $0x20] sm:$0xff]
    %v1034 = vld [vmem:[#allocation7 + $0x28] sm:$0xff]
    %v1035 = vld [vmem:[#allocation7 + $0x30] sm:$0xff]
    %v1036 = vld [vmem:[#allocation7 + $0x38] sm:$0xff]
    %v1037 = vld [vmem:[#allocation7 + $0x40] sm:$0xff]
    %v1038 = vld [vmem:[#allocation7 + $0x48] sm:$0xff]
    %v1039 = vld [vmem:[#allocation7 + $0x50] sm:$0xff]
    %v1040 = vld [vmem:[#allocation7 + $0x58] sm:$0xff]
    %v1041 = vld [vmem:[#allocation7 + $0x60] sm:$0xff]
    %v1042 = vld [vmem:[#allocation7 + $0x68] sm:$0xff]
    %v1043 = vld [vmem:[#allocation7 + $0x70] sm:$0xff]
    %v1044 = vld [vmem:[#allocation7 + $0x78] sm:$0xff]
    %v1045 = vld [vmem:[#allocation7 + $0x80] sm:$0xff]
    %v1046 = vld [vmem:[#allocation7 + $0x88] sm:$0xff]
    %v1047 = vld [vmem:[#allocation7 + $0x90] sm:$0xff]
    %v1048 = vld [vmem:[#allocation7 + $0x98] sm:$0xff]
    %v1049 = vld [vmem:[#allocation7 + $0xa0] sm:$0xff]
    %v1050 = vld [vmem:[#allocation7 + $0xa8] sm:$0xff]
    %v1051 = vld [vmem:[#allocation7 + $0xb0] sm:$0xff]
    %v1052 = vld [vmem:[#allocation7 + $0xb8] sm:$0xff]
    %v1053 = vld [vmem:[#allocation7 + $0xc0] sm:$0xff]
    %v1054 = vld [vmem:[#allocation7 + $0xc8] sm:$0xff]
    %v1055 = vld [vmem:[#allocation7 + $0xd0] sm:$0xff]
    %v1056 = vld [vmem:[#allocation7 + $0xd8] sm:$0xff]
    %v1057 = vld [vmem:[#allocation7 + $0xe0] sm:$0xff]
    %v1058 = vld [vmem:[#allocation7 + $0xe8] sm:$0xff]
    %v1059 = vld [vmem:[#allocation7 + $0xf0] sm:$0xff]
    %v1060 = vld [vmem:[#allocation7 + $0xf8] sm:$0xff]
    %v1061 = vld [vmem:[#allocation7 + $0x100] sm:$0xff]
    %v1062 = vld [vmem:[#allocation7 + $0x108] sm:$0xff]
    %v1063 = vld [vmem:[#allocation7 + $0x110] sm:$0xff]
    %v1064 = vld [vmem:[#allocation7 + $0x118] sm:$0xff]
    %v1065 = vld [vmem:[#allocation7 + $0x120] sm:$0xff]
    %v1066 = vld [vmem:[#allocation7 + $0x128] sm:$0xff]
    %v1067 = vld [vmem:[#allocation7 + $0x130] sm:$0xff]
    %v1068 = vld [vmem:[#allocation7 + $0x138] sm:$0xff]
    %v1069 = vld [vmem:[#allocation7 + $0x140] sm:$0xff]
    %v1070 = vld [vmem:[#allocation7 + $0x148] sm:$0xff]
    %v1071 = vld [vmem:[#allocation7 + $0x150] sm:$0xff]
    %v1072 = vld [vmem:[#allocation7 + $0x158] sm:$0xff]
    %v1073 = vld [vmem:[#allocation7 + $0x160] sm:$0xff]
    %v1074 = vld [vmem:[#allocation7 + $0x168] sm:$0xff]
    %v1075 = vld [vmem:[#allocation7 + $0x170] sm:$0xff]
    %v1076 = vld [vmem:[#allocation7 + $0x178] sm:$0xff]
    %v1077 = vld [vmem:[#allocation7 + $0x180] sm:$0xff]
    %v1078 = vld [vmem:[#allocation7 + $0x188] sm:$0xff]
    %v1079 = vld [vmem:[#allocation7 + $0x190] sm:$0xff]
    %v1080 = vld [vmem:[#allocation7 + $0x198] sm:$0xff]
    %v1081 = vld [vmem:[#allocation7 + $0x1a0] sm:$0xff]
    %v1082 = vld [vmem:[#allocation7 + $0x1a8] sm:$0xff]
    %v1083 = vld [vmem:[#allocation7 + $0x1b0] sm:$0xff]
    %v1084 = vld [vmem:[#allocation7 + $0x1b8] sm:$0xff]
    %v1085 = vld [vmem:[#allocation7 + $0x1c0] sm:$0xff]
    %v1086 = vld [vmem:[#allocation7 + $0x1c8] sm:$0xff]
    %v1087 = vld [vmem:[#allocation7 + $0x1d0] sm:$0xff]
    %v1088 = vld [vmem:[#allocation7 + $0x1d8] sm:$0xff]
    %v1089 = vld [vmem:[#allocation7 + $0x1e0] sm:$0xff]
    %v1090 = vld [vmem:[#allocation7 + $0x1e8] sm:$0xff]
    %v1091 = vld [vmem:[#allocation7 + $0x1f0] sm:$0xff]
    %v1092 = vld [vmem:[#allocation7 + $0x1f8] sm:$0xff]
    %1093 = vmatprep.subr.mxu0 %v1030
    %1094 = vmatpush1.msra.mxu0 %v1029
    %1095 = vmatprep.subr.mxu0 %v1034
    %1096 = vmatpush1.msra.mxu0 %v1033
    %1097 = vmatprep.subr.mxu0 %v1038
    %1098 = vmatpush1.msra.mxu0 %v1037
    %1099 = vmatprep.subr.mxu0 %v1042
    %1100 = vmatpush1.msra.mxu0 %v1041
    %1101 = vmatprep.subr.mxu0 %v1046
    %1102 = vmatpush1.msra.mxu0 %v1045
    %1103 = vmatprep.subr.mxu0 %v1050
    %1104 = vmatpush1.msra.mxu0 %v1049
    %1105 = vmatprep.subr.mxu0 %v1054
    %1106 = vmatpush1.msra.mxu0 %v1053
    %1107 = vmatprep.subr.mxu0 %v1058
    %1108 = vmatpush1.msra.mxu0 %v1057
    %1109 = vmatprep.subr.mxu0 %v1062
    %1110 = vmatpush1.msra.mxu0 %v1061
    %1111 = vmatprep.subr.mxu0 %v1066
    %1112 = vmatpush1.msra.mxu0 %v1065
    %1113 = vmatprep.subr.mxu0 %v1070
    %1114 = vmatpush1.msra.mxu0 %v1069
    %1115 = vmatprep.subr.mxu0 %v1074
    %1116 = vmatpush1.msra.mxu0 %v1073
    %1117 = vmatprep.subr.mxu0 %v1078
    %1118 = vmatpush1.msra.mxu0 %v1077
    %1119 = vmatprep.subr.mxu0 %v1082
    %1120 = vmatpush1.msra.mxu0 %v1081
    %1121 = vmatprep.subr.mxu0 %v1086
    %1122 = vmatpush1.msra.mxu0 %v1085
    %1123 = vmatprep.subr.mxu0 %v1090
    %1124 = vmatpush1.msra.mxu0 %v1089
    %1125 = vmatprep.subr.mxu0 0.0
    %1126 = vmatpush1.msra.mxu0 0.0
    %1127 = vmatprep.subr.mxu0 0.0
    %1128 = vmatpush1.msra.mxu0 0.0
    %1129 = vmatprep.subr.mxu0 0.0
    %1130 = vmatpush1.msra.mxu0 0.0
    %1131 = vmatprep.subr.mxu0 0.0
    %1132 = vmatpush1.msra.mxu0 0.0
    %1133 = vmatprep.subr.mxu0 0.0
    %1134 = vmatpush1.msra.mxu0 0.0
    %1135 = vmatprep.subr.mxu0 0.0
    %1136 = vmatpush1.msra.mxu0 0.0
    %1137 = vmatprep.subr.mxu0 0.0
    %1138 = vmatpush1.msra.mxu0 0.0
    %1139 = vmatprep.subr.mxu0 0.0
    %1140 = vmatpush1.msra.mxu0 0.0
    %1141 = vmatprep.subr.mxu0 0.0
    %1142 = vmatpush1.msra.mxu0 0.0
    %1143 = vmatprep.subr.mxu0 0.0
    %1144 = vmatpush1.msra.mxu0 0.0
    %1145 = vmatprep.subr.mxu0 0.0
    %1146 = vmatpush1.msra.mxu0 0.0
    %1147 = vmatprep.subr.mxu0 0.0
    %1148 = vmatpush1.msra.mxu0 0.0
    %1149 = vmatprep.subr.mxu0 0.0
    %1150 = vmatpush1.msra.mxu0 0.0
    %1151 = vmatprep.subr.mxu0 0.0
    %1152 = vmatpush1.msra.mxu0 0.0
    %1153 = vmatprep.subr.mxu0 0.0
    %1154 = vmatpush1.msra.mxu0 0.0
    %1155 = vmatprep.subr.mxu0 0.0
    %1156 = vmatpush1.msra.mxu0 0.0
    %1157 = vmatprep.mubr.f32.mxu0 0.0
    %1158 = vmatmul.mubr.f32.gmra.mrb[0].mxu0 %v1025
    %v1159 = vpop.f32.mrb[0].mxu0
    %v1160 = vadd.f32 0.0, %v1159
    %v1161 = vpop.f32.mrb[0].mxu0
    %v1162 = vadd.f32 0.0, %v1161
    %1163 = vdwg.mxu0
    %1164 = vmatprep.subr.mxu0 %v1032
    %1165 = vmatpush1.msra.mxu0 %v1031
    %1166 = vmatprep.subr.mxu0 %v1036
    %1167 = vmatpush1.msra.mxu0 %v1035
    %1168 = vmatprep.subr.mxu0 %v1040
    %1169 = vmatpush1.msra.mxu0 %v1039
    %1170 = vmatprep.subr.mxu0 %v1044
    %1171 = vmatpush1.msra.mxu0 %v1043
    %1172 = vmatprep.subr.mxu0 %v1048
    %1173 = vmatpush1.msra.mxu0 %v1047
    %1174 = vmatprep.subr.mxu0 %v1052
    %1175 = vmatpush1.msra.mxu0 %v1051
    %1176 = vmatprep.subr.mxu0 %v1056
    %1177 = vmatpush1.msra.mxu0 %v1055
    %1178 = vmatprep.subr.mxu0 %v1060
    %1179 = vmatpush1.msra.mxu0 %v1059
    %1180 = vmatprep.subr.mxu0 %v1064
    %1181 = vmatpush1.msra.mxu0 %v1063
    %1182 = vmatprep.subr.mxu0 %v1068
    %1183 = vmatpush1.msra.mxu0 %v1067
    %1184 = vmatprep.subr.mxu0 %v1072
    %1185 = vmatpush1.msra.mxu0 %v1071
    %1186 = vmatprep.subr.mxu0 %v1076
    %1187 = vmatpush1.msra.mxu0 %v1075
    %1188 = vmatprep.subr.mxu0 %v1080
    %1189 = vmatpush1.msra.mxu0 %v1079
    %1190 = vmatprep.subr.mxu0 %v1084
    %1191 = vmatpush1.msra.mxu0 %v1083
    %1192 = vmatprep.subr.mxu0 %v1088
    %1193 = vmatpush1.msra.mxu0 %v1087
    %1194 = vmatprep.subr.mxu0 %v1092
    %1195 = vmatpush1.msra.mxu0 %v1091
    %1196 = vmatprep.subr.mxu0 0.0
    %1197 = vmatpush1.msra.mxu0 0.0
    %1198 = vmatprep.subr.mxu0 0.0
    %1199 = vmatpush1.msra.mxu0 0.0
    %1200 = vmatprep.subr.mxu0 0.0
    %1201 = vmatpush1.msra.mxu0 0.0
    %1202 = vmatprep.subr.mxu0 0.0
    %1203 = vmatpush1.msra.mxu0 0.0
    %1204 = vmatprep.subr.mxu0 0.0
    %1205 = vmatpush1.msra.mxu0 0.0
    %1206 = vmatprep.subr.mxu0 0.0
    %1207 = vmatpush1.msra.mxu0 0.0
    %1208 = vmatprep.subr.mxu0 0.0
    %1209 = vmatpush1.msra.mxu0 0.0
    %1210 = vmatprep.subr.mxu0 0.0
    %1211 = vmatpush1.msra.mxu0 0.0
    %1212 = vmatprep.subr.mxu0 0.0
    %1213 = vmatpush1.msra.mxu0 0.0
    %1214 = vmatprep.subr.mxu0 0.0
    %1215 = vmatpush1.msra.mxu0 0.0
    %1216 = vmatprep.subr.mxu0 0.0
    %1217 = vmatpush1.msra.mxu0 0.0
    %1218 = vmatprep.subr.mxu0 0.0
    %1219 = vmatpush1.msra.mxu0 0.0
    %1220 = vmatprep.subr.mxu0 0.0
    %1221 = vmatpush1.msra.mxu0 0.0
    %1222 = vmatprep.subr.mxu0 0.0
    %1223 = vmatpush1.msra.mxu0 0.0
    %1224 = vmatprep.subr.mxu0 0.0
    %1225 = vmatpush1.msra.mxu0 0.0
    %1226 = vmatprep.subr.mxu0 0.0
    %1227 = vmatpush1.msra.mxu0 0.0
    %1228 = vmatprep.mubr.f32.mxu0 0.0
    %1229 = vmatmul.mubr.f32.gmra.mrb[0].mxu0 %v1025
    %v1230 = vpop.f32.mrb[0].mxu0
    %v1231 = vadd.f32 0.0, %v1230
    %v1232 = vpop.f32.mrb[0].mxu0
    %v1233 = vadd.f32 0.0, %v1232
    %1234 = vdwg.mxu0
    %v1239 = vcombine.low %v1160, %v1162
    %v1240 = vcombine.low %v1231, %v1233
    %v1242 = vunpack.c.l.s4 1966171168
    %v1243 = vunpack.c.0.s8 %v1242
    %v1244 = vlaneseq
    %v1245 = vshrl.u32 %v1244, 7
    %v1246 = vsub.s32 %v1243, %v1245
    %v1247 = vrot.slane %v1239, %v1246
    %v1249 = vunpack.c.l.s4 1966171168
    %v1250 = vunpack.c.0.s8 %v1249
    %v1251 = vlaneseq
    %v1252 = vshrl.u32 %v1251, 7
    %v1253 = vsub.s32 %v1250, %v1252
    %v1254 = vrot.slane %v1240, %v1253
    %v1255 = vcombine.low %v1247, %v1254
    %v1257 = vunpack.c.l.s4 1966171168
    %v1258 = vunpack.c.0.s8 %v1257
    %v1259 = vlaneseq
    %v1260 = vshrl.u32 %v1259, 7
    %v1261 = vsub.s32 %v1258, %v1260
    %v1262 = vrot.slane %v1255, %v1261
    %v1264 = vadd.f32 %v1028, %v1262
    %v1265 = vxor.u32 %v1264, 2147483648
    %v1266 = vmul.f32 %v1265, 1.442695
    %v1267 = vpow.pop %v1266
    %v1268 = vadd.f32 %v1267, 1.0
    %v1269 = vrcp.pop %v1268
    %v1270 = vmul.f32 1.0, %v1269
    %v1272 = vrot.slane %v1264, 3
    %v1274 = vtanh.pop %v1272
    %v1276 = vrot.slane %v1270, 1
    %v1278 = vmul.f32 %v1276, %v1021
    %v1279 = vmul.f32 %v1270, %v1274
    %v1280 = vadd.f32 %v1278, %v1279
    %v1281 = vtanh.pop %v1280
    %v1282 = vrot.slane %v1270, 2
    %v1284 = vmul.f32 %v1282, %v1281
    %1285 = vst [vmem:[#allocation3 + $0x3] sm:$0x1] %v1284
    %s1286 = scalar_lea.vmem [#allocation2], 4
    %v1287 = vld [vmem:[%s1286] ss:$8 sm:$0xf]
    %v1288 = vld [vmem:[#allocation7] sm:$0xff]
    %v1289 = vld [vmem:[#allocation7 + $0x8] sm:$0xff]
    %v1290 = vld [vmem:[#allocation7 + $0x10] sm:$0xff]
    %v1291 = vld [vmem:[#allocation7 + $0x18] sm:$0xff]
    %v1292 = vld [vmem:[#allocation7 + $0x20] sm:$0xff]
    %v1293 = vld [vmem:[#allocation7 + $0x28] sm:$0xff]
    %v1294 = vld [vmem:[#allocation7 + $0x30] sm:$0xff]
    %v1295 = vld [vmem:[#allocation7 + $0x38] sm:$0xff]
    %v1296 = vld [vmem:[#allocation7 + $0x40] sm:$0xff]
    %v1297 = vld [vmem:[#allocation7 + $0x48] sm:$0xff]
    %v1298 = vld [vmem:[#allocation7 + $0x50] sm:$0xff]
    %v1299 = vld [vmem:[#allocation7 + $0x58] sm:$0xff]
    %v1300 = vld [vmem:[#allocation7 + $0x60] sm:$0xff]
    %v1301 = vld [vmem:[#allocation7 + $0x68] sm:$0xff]
    %v1302 = vld [vmem:[#allocation7 + $0x70] sm:$0xff]
    %v1303 = vld [vmem:[#allocation7 + $0x78] sm:$0xff]
    %v1304 = vld [vmem:[#allocation7 + $0x80] sm:$0xff]
    %v1305 = vld [vmem:[#allocation7 + $0x88] sm:$0xff]
    %v1306 = vld [vmem:[#allocation7 + $0x90] sm:$0xff]
    %v1307 = vld [vmem:[#allocation7 + $0x98] sm:$0xff]
    %v1308 = vld [vmem:[#allocation7 + $0xa0] sm:$0xff]
    %v1309 = vld [vmem:[#allocation7 + $0xa8] sm:$0xff]
    %v1310 = vld [vmem:[#allocation7 + $0xb0] sm:$0xff]
    %v1311 = vld [vmem:[#allocation7 + $0xb8] sm:$0xff]
    %v1312 = vld [vmem:[#allocation7 + $0xc0] sm:$0xff]
    %v1313 = vld [vmem:[#allocation7 + $0xc8] sm:$0xff]
    %v1314 = vld [vmem:[#allocation7 + $0xd0] sm:$0xff]
    %v1315 = vld [vmem:[#allocation7 + $0xd8] sm:$0xff]
    %v1316 = vld [vmem:[#allocation7 + $0xe0] sm:$0xff]
    %v1317 = vld [vmem:[#allocation7 + $0xe8] sm:$0xff]
    %v1318 = vld [vmem:[#allocation7 + $0xf0] sm:$0xff]
    %v1319 = vld [vmem:[#allocation7 + $0xf8] sm:$0xff]
    %v1320 = vld [vmem:[#allocation7 + $0x100] sm:$0xff]
    %v1321 = vld [vmem:[#allocation7 + $0x108] sm:$0xff]
    %v1322 = vld [vmem:[#allocation7 + $0x110] sm:$0xff]
    %v1323 = vld [vmem:[#allocation7 + $0x118] sm:$0xff]
    %v1324 = vld [vmem:[#allocation7 + $0x120] sm:$0xff]
    %v1325 = vld [vmem:[#allocation7 + $0x128] sm:$0xff]
    %v1326 = vld [vmem:[#allocation7 + $0x130] sm:$0xff]
    %v1327 = vld [vmem:[#allocation7 + $0x138] sm:$0xff]
    %v1328 = vld [vmem:[#allocation7 + $0x140] sm:$0xff]
    %v1329 = vld [vmem:[#allocation7 + $0x148] sm:$0xff]
    %v1330 = vld [vmem:[#allocation7 + $0x150] sm:$0xff]
    %v1331 = vld [vmem:[#allocation7 + $0x158] sm:$0xff]
    %v1332 = vld [vmem:[#allocation7 + $0x160] sm:$0xff]
    %v1333 = vld [vmem:[#allocation7 + $0x168] sm:$0xff]
    %v1334 = vld [vmem:[#allocation7 + $0x170] sm:$0xff]
    %v1335 = vld [vmem:[#allocation7 + $0x178] sm:$0xff]
    %v1336 = vld [vmem:[#allocation7 + $0x180] sm:$0xff]
    %v1337 = vld [vmem:[#allocation7 + $0x188] sm:$0xff]
    %v1338 = vld [vmem:[#allocation7 + $0x190] sm:$0xff]
    %v1339 = vld [vmem:[#allocation7 + $0x198] sm:$0xff]
    %v1340 = vld [vmem:[#allocation7 + $0x1a0] sm:$0xff]
    %v1341 = vld [vmem:[#allocation7 + $0x1a8] sm:$0xff]
    %v1342 = vld [vmem:[#allocation7 + $0x1b0] sm:$0xff]
    %v1343 = vld [vmem:[#allocation7 + $0x1b8] sm:$0xff]
    %v1344 = vld [vmem:[#allocation7 + $0x1c0] sm:$0xff]
    %v1345 = vld [vmem:[#allocation7 + $0x1c8] sm:$0xff]
    %v1346 = vld [vmem:[#allocation7 + $0x1d0] sm:$0xff]
    %v1347 = vld [vmem:[#allocation7 + $0x1d8] sm:$0xff]
    %v1348 = vld [vmem:[#allocation7 + $0x1e0] sm:$0xff]
    %v1349 = vld [vmem:[#allocation7 + $0x1e8] sm:$0xff]
    %v1350 = vld [vmem:[#allocation7 + $0x1f0] sm:$0xff]
    %v1351 = vld [vmem:[#allocation7 + $0x1f8] sm:$0xff]
    %1352 = vmatprep.subr.mxu0 %v1289
    %1353 = vmatpush1.msra.mxu0 %v1288
    %1354 = vmatprep.subr.mxu0 %v1293
    %1355 = vmatpush1.msra.mxu0 %v1292
    %1356 = vmatprep.subr.mxu0 %v1297
    %1357 = vmatpush1.msra.mxu0 %v1296
    %1358 = vmatprep.subr.mxu0 %v1301
    %1359 = vmatpush1.msra.mxu0 %v1300
    %1360 = vmatprep.subr.mxu0 %v1305
    %1361 = vmatpush1.msra.mxu0 %v1304
    %1362 = vmatprep.subr.mxu0 %v1309
    %1363 = vmatpush1.msra.mxu0 %v1308
    %1364 = vmatprep.subr.mxu0 %v1313
    %1365 = vmatpush1.msra.mxu0 %v1312
    %1366 = vmatprep.subr.mxu0 %v1317
    %1367 = vmatpush1.msra.mxu0 %v1316
    %1368 = vmatprep.subr.mxu0 %v1321
    %1369 = vmatpush1.msra.mxu0 %v1320
    %1370 = vmatprep.subr.mxu0 %v1325
    %1371 = vmatpush1.msra.mxu0 %v1324
    %1372 = vmatprep.subr.mxu0 %v1329
    %1373 = vmatpush1.msra.mxu0 %v1328
    %1374 = vmatprep.subr.mxu0 %v1333
    %1375 = vmatpush1.msra.mxu0 %v1332
    %1376 = vmatprep.subr.mxu0 %v1337
    %1377 = vmatpush1.msra.mxu0 %v1336
    %1378 = vmatprep.subr.mxu0 %v1341
    %1379 = vmatpush1.msra.mxu0 %v1340
    %1380 = vmatprep.subr.mxu0 %v1345
    %1381 = vmatpush1.msra.mxu0 %v1344
    %1382 = vmatprep.subr.mxu0 %v1349
    %1383 = vmatpush1.msra.mxu0 %v1348
    %1384 = vmatprep.subr.mxu0 0.0
    %1385 = vmatpush1.msra.mxu0 0.0
    %1386 = vmatprep.subr.mxu0 0.0
    %1387 = vmatpush1.msra.mxu0 0.0
    %1388 = vmatprep.subr.mxu0 0.0
    %1389 = vmatpush1.msra.mxu0 0.0
    %1390 = vmatprep.subr.mxu0 0.0
    %1391 = vmatpush1.msra.mxu0 0.0
    %1392 = vmatprep.subr.mxu0 0.0
    %1393 = vmatpush1.msra.mxu0 0.0
    %1394 = vmatprep.subr.mxu0 0.0
    %1395 = vmatpush1.msra.mxu0 0.0
    %1396 = vmatprep.subr.mxu0 0.0
    %1397 = vmatpush1.msra.mxu0 0.0
    %1398 = vmatprep.subr.mxu0 0.0
    %1399 = vmatpush1.msra.mxu0 0.0
    %1400 = vmatprep.subr.mxu0 0.0
    %1401 = vmatpush1.msra.mxu0 0.0
    %1402 = vmatprep.subr.mxu0 0.0
    %1403 = vmatpush1.msra.mxu0 0.0
    %1404 = vmatprep.subr.mxu0 0.0
    %1405 = vmatpush1.msra.mxu0 0.0
    %1406 = vmatprep.subr.mxu0 0.0
    %1407 = vmatpush1.msra.mxu0 0.0
    %1408 = vmatprep.subr.mxu0 0.0
    %1409 = vmatpush1.msra.mxu0 0.0
    %1410 = vmatprep.subr.mxu0 0.0
    %1411 = vmatpush1.msra.mxu0 0.0
    %1412 = vmatprep.subr.mxu0 0.0
    %1413 = vmatpush1.msra.mxu0 0.0
    %1414 = vmatprep.subr.mxu0 0.0
    %1415 = vmatpush1.msra.mxu0 0.0
    %1416 = vmatprep.mubr.f32.mxu0 0.0
    %1417 = vmatmul.mubr.f32.gmra.mrb[0].mxu0 %v1284
    %v1418 = vpop.f32.mrb[0].mxu0
    %v1419 = vadd.f32 0.0, %v1418
    %v1420 = vpop.f32.mrb[0].mxu0
    %v1421 = vadd.f32 0.0, %v1420
    %1422 = vdwg.mxu0
    %1423 = vmatprep.subr.mxu0 %v1291
    %1424 = vmatpush1.msra.mxu0 %v1290
    %1425 = vmatprep.subr.mxu0 %v1295
    %1426 = vmatpush1.msra.mxu0 %v1294
    %1427 = vmatprep.subr.mxu0 %v1299
    %1428 = vmatpush1.msra.mxu0 %v1298
    %1429 = vmatprep.subr.mxu0 %v1303
    %1430 = vmatpush1.msra.mxu0 %v1302
    %1431 = vmatprep.subr.mxu0 %v1307
    %1432 = vmatpush1.msra.mxu0 %v1306
    %1433 = vmatprep.subr.mxu0 %v1311
    %1434 = vmatpush1.msra.mxu0 %v1310
    %1435 = vmatprep.subr.mxu0 %v1315
    %1436 = vmatpush1.msra.mxu0 %v1314
    %1437 = vmatprep.subr.mxu0 %v1319
    %1438 = vmatpush1.msra.mxu0 %v1318
    %1439 = vmatprep.subr.mxu0 %v1323
    %1440 = vmatpush1.msra.mxu0 %v1322
    %1441 = vmatprep.subr.mxu0 %v1327
    %1442 = vmatpush1.msra.mxu0 %v1326
    %1443 = vmatprep.subr.mxu0 %v1331
    %1444 = vmatpush1.msra.mxu0 %v1330
    %1445 = vmatprep.subr.mxu0 %v1335
    %1446 = vmatpush1.msra.mxu0 %v1334
    %1447 = vmatprep.subr.mxu0 %v1339
    %1448 = vmatpush1.msra.mxu0 %v1338
    %1449 = vmatprep.subr.mxu0 %v1343
    %1450 = vmatpush1.msra.mxu0 %v1342
    %1451 = vmatprep.subr.mxu0 %v1347
    %1452 = vmatpush1.msra.mxu0 %v1346
    %1453 = vmatprep.subr.mxu0 %v1351
    %1454 = vmatpush1.msra.mxu0 %v1350
    %1455 = vmatprep.subr.mxu0 0.0
    %1456 = vmatpush1.msra.mxu0 0.0
    %1457 = vmatprep.subr.mxu0 0.0
    %1458 = vmatpush1.msra.mxu0 0.0
    %1459 = vmatprep.subr.mxu0 0.0
    %1460 = vmatpush1.msra.mxu0 0.0
    %1461 = vmatprep.subr.mxu0 0.0
    %1462 = vmatpush1.msra.mxu0 0.0
    %1463 = vmatprep.subr.mxu0 0.0
    %1464 = vmatpush1.msra.mxu0 0.0
    %1465 = vmatprep.subr.mxu0 0.0
    %1466 = vmatpush1.msra.mxu0 0.0
    %1467 = vmatprep.subr.mxu0 0.0
    %1468 = vmatpush1.msra.mxu0 0.0
    %1469 = vmatprep.subr.mxu0 0.0
    %1470 = vmatpush1.msra.mxu0 0.0
    %1471 = vmatprep.subr.mxu0 0.0
    %1472 = vmatpush1.msra.mxu0 0.0
    %1473 = vmatprep.subr.mxu0 0.0
    %1474 = vmatpush1.msra.mxu0 0.0
    %1475 = vmatprep.subr.mxu0 0.0
    %1476 = vmatpush1.msra.mxu0 0.0
    %1477 = vmatprep.subr.mxu0 0.0
    %1478 = vmatpush1.msra.mxu0 0.0
    %1479 = vmatprep.subr.mxu0 0.0
    %1480 = vmatpush1.msra.mxu0 0.0
    %1481 = vmatprep.subr.mxu0 0.0
    %1482 = vmatpush1.msra.mxu0 0.0
    %1483 = vmatprep.subr.mxu0 0.0
    %1484 = vmatpush1.msra.mxu0 0.0
    %1485 = vmatprep.subr.mxu0 0.0
    %1486 = vmatpush1.msra.mxu0 0.0
    %1487 = vmatprep.mubr.f32.mxu0 0.0
    %1488 = vmatmul.mubr.f32.gmra.mrb[0].mxu0 %v1284
    %v1489 = vpop.f32.mrb[0].mxu0
    %v1490 = vadd.f32 0.0, %v1489
    %v1491 = vpop.f32.mrb[0].mxu0
    %v1492 = vadd.f32 0.0, %v1491
    %1493 = vdwg.mxu0
    %v1498 = vcombine.low %v1419, %v1421
    %v1499 = vcombine.low %v1490, %v1492
    %v1501 = vunpack.c.l.s4 1966171168
    %v1502 = vunpack.c.0.s8 %v1501
    %v1503 = vlaneseq
    %v1504 = vshrl.u32 %v1503, 7
    %v1505 = vsub.s32 %v1502, %v1504
    %v1506 = vrot.slane %v1498, %v1505
    %v1508 = vunpack.c.l.s4 1966171168
    %v1509 = vunpack.c.0.s8 %v1508
    %v1510 = vlaneseq
    %v1511 = vshrl.u32 %v1510, 7
    %v1512 = vsub.s32 %v1509, %v1511
    %v1513 = vrot.slane %v1499, %v1512
    %v1514 = vcombine.low %v1506, %v1513
    %v1516 = vunpack.c.l.s4 1966171168
    %v1517 = vunpack.c.0.s8 %v1516
    %v1518 = vlaneseq
    %v1519 = vshrl.u32 %v1518, 7
    %v1520 = vsub.s32 %v1517, %v1519
    %v1521 = vrot.slane %v1514, %v1520
    %v1523 = vadd.f32 %v1287, %v1521
    %v1524 = vxor.u32 %v1523, 2147483648
    %v1525 = vmul.f32 %v1524, 1.442695
    %v1526 = vpow.pop %v1525
    %v1527 = vadd.f32 %v1526, 1.0
    %v1528 = vrcp.pop %v1527
    %v1529 = vmul.f32 1.0, %v1528
    %v1531 = vrot.slane %v1523, 3
    %v1533 = vtanh.pop %v1531
    %v1535 = vrot.slane %v1529, 1
    %v1537 = vmul.f32 %v1535, %v1280
    %v1538 = vmul.f32 %v1529, %v1533
    %v1539 = vadd.f32 %v1537, %v1538
    %v1540 = vtanh.pop %v1539
    %v1541 = vrot.slane %v1529, 2
    %v1543 = vmul.f32 %v1541, %v1540
    %1544 = vst [vmem:[#allocation3 + $0x4] sm:$0x1] %v1543
    %s1545 = scalar_lea.vmem [#allocation2], 5
    %v1546 = vld [vmem:[%s1545] ss:$8 sm:$0xf]
    %v1547 = vld [vmem:[#allocation7] sm:$0xff]
    %v1548 = vld [vmem:[#allocation7 + $0x8] sm:$0xff]
    %v1549 = vld [vmem:[#allocation7 + $0x10] sm:$0xff]
    %v1550 = vld [vmem:[#allocation7 + $0x18] sm:$0xff]
    %v1551 = vld [vmem:[#allocation7 + $0x20] sm:$0xff]
    %v1552 = vld [vmem:[#allocation7 + $0x28] sm:$0xff]
    %v1553 = vld [vmem:[#allocation7 + $0x30] sm:$0xff]
    %v1554 = vld [vmem:[#allocation7 + $0x38] sm:$0xff]
    %v1555 = vld [vmem:[#allocation7 + $0x40] sm:$0xff]
    %v1556 = vld [vmem:[#allocation7 + $0x48] sm:$0xff]
    %v1557 = vld [vmem:[#allocation7 + $0x50] sm:$0xff]
    %v1558 = vld [vmem:[#allocation7 + $0x58] sm:$0xff]
    %v1559 = vld [vmem:[#allocation7 + $0x60] sm:$0xff]
    %v1560 = vld [vmem:[#allocation7 + $0x68] sm:$0xff]
    %v1561 = vld [vmem:[#allocation7 + $0x70] sm:$0xff]
    %v1562 = vld [vmem:[#allocation7 + $0x78] sm:$0xff]
    %v1563 = vld [vmem:[#allocation7 + $0x80] sm:$0xff]
    %v1564 = vld [vmem:[#allocation7 + $0x88] sm:$0xff]
    %v1565 = vld [vmem:[#allocation7 + $0x90] sm:$0xff]
    %v1566 = vld [vmem:[#allocation7 + $0x98] sm:$0xff]
    %v1567 = vld [vmem:[#allocation7 + $0xa0] sm:$0xff]
    %v1568 = vld [vmem:[#allocation7 + $0xa8] sm:$0xff]
    %v1569 = vld [vmem:[#allocation7 + $0xb0] sm:$0xff]
    %v1570 = vld [vmem:[#allocation7 + $0xb8] sm:$0xff]
    %v1571 = vld [vmem:[#allocation7 + $0xc0] sm:$0xff]
    %v1572 = vld [vmem:[#allocation7 + $0xc8] sm:$0xff]
    %v1573 = vld [vmem:[#allocation7 + $0xd0] sm:$0xff]
    %v1574 = vld [vmem:[#allocation7 + $0xd8] sm:$0xff]
    %v1575 = vld [vmem:[#allocation7 + $0xe0] sm:$0xff]
    %v1576 = vld [vmem:[#allocation7 + $0xe8] sm:$0xff]
    %v1577 = vld [vmem:[#allocation7 + $0xf0] sm:$0xff]
    %v1578 = vld [vmem:[#allocation7 + $0xf8] sm:$0xff]
    %v1579 = vld [vmem:[#allocation7 + $0x100] sm:$0xff]
    %v1580 = vld [vmem:[#allocation7 + $0x108] sm:$0xff]
    %v1581 = vld [vmem:[#allocation7 + $0x110] sm:$0xff]
    %v1582 = vld [vmem:[#allocation7 + $0x118] sm:$0xff]
    %v1583 = vld [vmem:[#allocation7 + $0x120] sm:$0xff]
    %v1584 = vld [vmem:[#allocation7 + $0x128] sm:$0xff]
    %v1585 = vld [vmem:[#allocation7 + $0x130] sm:$0xff]
    %v1586 = vld [vmem:[#allocation7 + $0x138] sm:$0xff]
    %v1587 = vld [vmem:[#allocation7 + $0x140] sm:$0xff]
    %v1588 = vld [vmem:[#allocation7 + $0x148] sm:$0xff]
    %v1589 = vld [vmem:[#allocation7 + $0x150] sm:$0xff]
    %v1590 = vld [vmem:[#allocation7 + $0x158] sm:$0xff]
    %v1591 = vld [vmem:[#allocation7 + $0x160] sm:$0xff]
    %v1592 = vld [vmem:[#allocation7 + $0x168] sm:$0xff]
    %v1593 = vld [vmem:[#allocation7 + $0x170] sm:$0xff]
    %v1594 = vld [vmem:[#allocation7 + $0x178] sm:$0xff]
    %v1595 = vld [vmem:[#allocation7 + $0x180] sm:$0xff]
    %v1596 = vld [vmem:[#allocation7 + $0x188] sm:$0xff]
    %v1597 = vld [vmem:[#allocation7 + $0x190] sm:$0xff]
    %v1598 = vld [vmem:[#allocation7 + $0x198] sm:$0xff]
    %v1599 = vld [vmem:[#allocation7 + $0x1a0] sm:$0xff]
    %v1600 = vld [vmem:[#allocation7 + $0x1a8] sm:$0xff]
    %v1601 = vld [vmem:[#allocation7 + $0x1b0] sm:$0xff]
    %v1602 = vld [vmem:[#allocation7 + $0x1b8] sm:$0xff]
    %v1603 = vld [vmem:[#allocation7 + $0x1c0] sm:$0xff]
    %v1604 = vld [vmem:[#allocation7 + $0x1c8] sm:$0xff]
    %v1605 = vld [vmem:[#allocation7 + $0x1d0] sm:$0xff]
    %v1606 = vld [vmem:[#allocation7 + $0x1d8] sm:$0xff]
    %v1607 = vld [vmem:[#allocation7 + $0x1e0] sm:$0xff]
    %v1608 = vld [vmem:[#allocation7 + $0x1e8] sm:$0xff]
    %v1609 = vld [vmem:[#allocation7 + $0x1f0] sm:$0xff]
    %v1610 = vld [vmem:[#allocation7 + $0x1f8] sm:$0xff]
    %1611 = vmatprep.subr.mxu0 %v1548
    %1612 = vmatpush1.msra.mxu0 %v1547
    %1613 = vmatprep.subr.mxu0 %v1552
    %1614 = vmatpush1.msra.mxu0 %v1551
    %1615 = vmatprep.subr.mxu0 %v1556
    %1616 = vmatpush1.msra.mxu0 %v1555
    %1617 = vmatprep.subr.mxu0 %v1560
    %1618 = vmatpush1.msra.mxu0 %v1559
    %1619 = vmatprep.subr.mxu0 %v1564
    %1620 = vmatpush1.msra.mxu0 %v1563
    %1621 = vmatprep.subr.mxu0 %v1568
    %1622 = vmatpush1.msra.mxu0 %v1567
    %1623 = vmatprep.subr.mxu0 %v1572
    %1624 = vmatpush1.msra.mxu0 %v1571
    %1625 = vmatprep.subr.mxu0 %v1576
    %1626 = vmatpush1.msra.mxu0 %v1575
    %1627 = vmatprep.subr.mxu0 %v1580
    %1628 = vmatpush1.msra.mxu0 %v1579
    %1629 = vmatprep.subr.mxu0 %v1584
    %1630 = vmatpush1.msra.mxu0 %v1583
    %1631 = vmatprep.subr.mxu0 %v1588
    %1632 = vmatpush1.msra.mxu0 %v1587
    %1633 = vmatprep.subr.mxu0 %v1592
    %1634 = vmatpush1.msra.mxu0 %v1591
    %1635 = vmatprep.subr.mxu0 %v1596
    %1636 = vmatpush1.msra.mxu0 %v1595
    %1637 = vmatprep.subr.mxu0 %v1600
    %1638 = vmatpush1.msra.mxu0 %v1599
    %1639 = vmatprep.subr.mxu0 %v1604
    %1640 = vmatpush1.msra.mxu0 %v1603
    %1641 = vmatprep.subr.mxu0 %v1608
    %1642 = vmatpush1.msra.mxu0 %v1607
    %1643 = vmatprep.subr.mxu0 0.0
    %1644 = vmatpush1.msra.mxu0 0.0
    %1645 = vmatprep.subr.mxu0 0.0
    %1646 = vmatpush1.msra.mxu0 0.0
    %1647 = vmatprep.subr.mxu0 0.0
    %1648 = vmatpush1.msra.mxu0 0.0
    %1649 = vmatprep.subr.mxu0 0.0
    %1650 = vmatpush1.msra.mxu0 0.0
    %1651 = vmatprep.subr.mxu0 0.0
    %1652 = vmatpush1.msra.mxu0 0.0
    %1653 = vmatprep.subr.mxu0 0.0
    %1654 = vmatpush1.msra.mxu0 0.0
    %1655 = vmatprep.subr.mxu0 0.0
    %1656 = vmatpush1.msra.mxu0 0.0
    %1657 = vmatprep.subr.mxu0 0.0
    %1658 = vmatpush1.msra.mxu0 0.0
    %1659 = vmatprep.subr.mxu0 0.0
    %1660 = vmatpush1.msra.mxu0 0.0
    %1661 = vmatprep.subr.mxu0 0.0
    %1662 = vmatpush1.msra.mxu0 0.0
    %1663 = vmatprep.subr.mxu0 0.0
    %1664 = vmatpush1.msra.mxu0 0.0
    %1665 = vmatprep.subr.mxu0 0.0
    %1666 = vmatpush1.msra.mxu0 0.0
    %1667 = vmatprep.subr.mxu0 0.0
    %1668 = vmatpush1.msra.mxu0 0.0
    %1669 = vmatprep.subr.mxu0 0.0
    %1670 = vmatpush1.msra.mxu0 0.0
    %1671 = vmatprep.subr.mxu0 0.0
    %1672 = vmatpush1.msra.mxu0 0.0
    %1673 = vmatprep.subr.mxu0 0.0
    %1674 = vmatpush1.msra.mxu0 0.0
    %1675 = vmatprep.mubr.f32.mxu0 0.0
    %1676 = vmatmul.mubr.f32.gmra.mrb[0].mxu0 %v1543
    %v1677 = vpop.f32.mrb[0].mxu0
    %v1678 = vadd.f32 0.0, %v1677
    %v1679 = vpop.f32.mrb[0].mxu0
    %v1680 = vadd.f32 0.0, %v1679
    %1681 = vdwg.mxu0
    %1682 = vmatprep.subr.mxu0 %v1550
    %1683 = vmatpush1.msra.mxu0 %v1549
    %1684 = vmatprep.subr.mxu0 %v1554
    %1685 = vmatpush1.msra.mxu0 %v1553
    %1686 = vmatprep.subr.mxu0 %v1558
    %1687 = vmatpush1.msra.mxu0 %v1557
    %1688 = vmatprep.subr.mxu0 %v1562
    %1689 = vmatpush1.msra.mxu0 %v1561
    %1690 = vmatprep.subr.mxu0 %v1566
    %1691 = vmatpush1.msra.mxu0 %v1565
    %1692 = vmatprep.subr.mxu0 %v1570
    %1693 = vmatpush1.msra.mxu0 %v1569
    %1694 = vmatprep.subr.mxu0 %v1574
    %1695 = vmatpush1.msra.mxu0 %v1573
    %1696 = vmatprep.subr.mxu0 %v1578
    %1697 = vmatpush1.msra.mxu0 %v1577
    %1698 = vmatprep.subr.mxu0 %v1582
    %1699 = vmatpush1.msra.mxu0 %v1581
    %1700 = vmatprep.subr.mxu0 %v1586
    %1701 = vmatpush1.msra.mxu0 %v1585
    %1702 = vmatprep.subr.mxu0 %v1590
    %1703 = vmatpush1.msra.mxu0 %v1589
    %1704 = vmatprep.subr.mxu0 %v1594
    %1705 = vmatpush1.msra.mxu0 %v1593
    %1706 = vmatprep.subr.mxu0 %v1598
    %1707 = vmatpush1.msra.mxu0 %v1597
    %1708 = vmatprep.subr.mxu0 %v1602
    %1709 = vmatpush1.msra.mxu0 %v1601
    %1710 = vmatprep.subr.mxu0 %v1606
    %1711 = vmatpush1.msra.mxu0 %v1605
    %1712 = vmatprep.subr.mxu0 %v1610
    %1713 = vmatpush1.msra.mxu0 %v1609
    %1714 = vmatprep.subr.mxu0 0.0
    %1715 = vmatpush1.msra.mxu0 0.0
    %1716 = vmatprep.subr.mxu0 0.0
    %1717 = vmatpush1.msra.mxu0 0.0
    %1718 = vmatprep.subr.mxu0 0.0
    %1719 = vmatpush1.msra.mxu0 0.0
    %1720 = vmatprep.subr.mxu0 0.0
    %1721 = vmatpush1.msra.mxu0 0.0
    %1722 = vmatprep.subr.mxu0 0.0
    %1723 = vmatpush1.msra.mxu0 0.0
    %1724 = vmatprep.subr.mxu0 0.0
    %1725 = vmatpush1.msra.mxu0 0.0
    %1726 = vmatprep.subr.mxu0 0.0
    %1727 = vmatpush1.msra.mxu0 0.0
    %1728 = vmatprep.subr.mxu0 0.0
    %1729 = vmatpush1.msra.mxu0 0.0
    %1730 = vmatprep.subr.mxu0 0.0
    %1731 = vmatpush1.msra.mxu0 0.0
    %1732 = vmatprep.subr.mxu0 0.0
    %1733 = vmatpush1.msra.mxu0 0.0
    %1734 = vmatprep.subr.mxu0 0.0
    %1735 = vmatpush1.msra.mxu0 0.0
    %1736 = vmatprep.subr.mxu0 0.0
    %1737 = vmatpush1.msra.mxu0 0.0
    %1738 = vmatprep.subr.mxu0 0.0
    %1739 = vmatpush1.msra.mxu0 0.0
    %1740 = vmatprep.subr.mxu0 0.0
    %1741 = vmatpush1.msra.mxu0 0.0
    %1742 = vmatprep.subr.mxu0 0.0
    %1743 = vmatpush1.msra.mxu0 0.0
    %1744 = vmatprep.subr.mxu0 0.0
    %1745 = vmatpush1.msra.mxu0 0.0
    %1746 = vmatprep.mubr.f32.mxu0 0.0
    %1747 = vmatmul.mubr.f32.gmra.mrb[0].mxu0 %v1543
    %v1748 = vpop.f32.mrb[0].mxu0
    %v1749 = vadd.f32 0.0, %v1748
    %v1750 = vpop.f32.mrb[0].mxu0
    %v1751 = vadd.f32 0.0, %v1750
    %1752 = vdwg.mxu0
    %v1757 = vcombine.low %v1678, %v1680
    %v1758 = vcombine.low %v1749, %v1751
    %v1760 = vunpack.c.l.s4 1966171168
    %v1761 = vunpack.c.0.s8 %v1760
    %v1762 = vlaneseq
    %v1763 = vshrl.u32 %v1762, 7
    %v1764 = vsub.s32 %v1761, %v1763
    %v1765 = vrot.slane %v1757, %v1764
    %v1767 = vunpack.c.l.s4 1966171168
    %v1768 = vunpack.c.0.s8 %v1767
    %v1769 = vlaneseq
    %v1770 = vshrl.u32 %v1769, 7
    %v1771 = vsub.s32 %v1768, %v1770
    %v1772 = vrot.slane %v1758, %v1771
    %v1773 = vcombine.low %v1765, %v1772
    %v1775 = vunpack.c.l.s4 1966171168
    %v1776 = vunpack.c.0.s8 %v1775
    %v1777 = vlaneseq
    %v1778 = vshrl.u32 %v1777, 7
    %v1779 = vsub.s32 %v1776, %v1778
    %v1780 = vrot.slane %v1773, %v1779
    %v1782 = vadd.f32 %v1546, %v1780
    %v1783 = vxor.u32 %v1782, 2147483648
    %v1784 = vmul.f32 %v1783, 1.442695
    %v1785 = vpow.pop %v1784
    %v1786 = vadd.f32 %v1785, 1.0
    %v1787 = vrcp.pop %v1786
    %v1788 = vmul.f32 1.0, %v1787
    %v1790 = vrot.slane %v1782, 3
    %v1792 = vtanh.pop %v1790
    %v1794 = vrot.slane %v1788, 1
    %v1796 = vmul.f32 %v1794, %v1539
    %v1797 = vmul.f32 %v1788, %v1792
    %v1798 = vadd.f32 %v1796, %v1797
    %v1799 = vtanh.pop %v1798
    %v1800 = vrot.slane %v1788, 2
    %v1802 = vmul.f32 %v1800, %v1799
    %1803 = vst [vmem:[#allocation3 + $0x5] sm:$0x1] %v1802
    %s1804 = scalar_lea.vmem [#allocation2], 6
    %v1805 = vld [vmem:[%s1804] ss:$8 sm:$0xf]
    %v1806 = vld [vmem:[#allocation7] sm:$0xff]
    %v1807 = vld [vmem:[#allocation7 + $0x8] sm:$0xff]
    %v1808 = vld [vmem:[#allocation7 + $0x10] sm:$0xff]
    %v1809 = vld [vmem:[#allocation7 + $0x18] sm:$0xff]
    %v1810 = vld [vmem:[#allocation7 + $0x20] sm:$0xff]
    %v1811 = vld [vmem:[#allocation7 + $0x28] sm:$0xff]
    %v1812 = vld [vmem:[#allocation7 + $0x30] sm:$0xff]
    %v1813 = vld [vmem:[#allocation7 + $0x38] sm:$0xff]
    %v1814 = vld [vmem:[#allocation7 + $0x40] sm:$0xff]
    %v1815 = vld [vmem:[#allocation7 + $0x48] sm:$0xff]
    %v1816 = vld [vmem:[#allocation7 + $0x50] sm:$0xff]
    %v1817 = vld [vmem:[#allocation7 + $0x58] sm:$0xff]
    %v1818 = vld [vmem:[#allocation7 + $0x60] sm:$0xff]
    %v1819 = vld [vmem:[#allocation7 + $0x68] sm:$0xff]
    %v1820 = vld [vmem:[#allocation7 + $0x70] sm:$0xff]
    %v1821 = vld [vmem:[#allocation7 + $0x78] sm:$0xff]
    %v1822 = vld [vmem:[#allocation7 + $0x80] sm:$0xff]
    %v1823 = vld [vmem:[#allocation7 + $0x88] sm:$0xff]
    %v1824 = vld [vmem:[#allocation7 + $0x90] sm:$0xff]
    %v1825 = vld [vmem:[#allocation7 + $0x98] sm:$0xff]
    %v1826 = vld [vmem:[#allocation7 + $0xa0] sm:$0xff]
    %v1827 = vld [vmem:[#allocation7 + $0xa8] sm:$0xff]
    %v1828 = vld [vmem:[#allocation7 + $0xb0] sm:$0xff]
    %v1829 = vld [vmem:[#allocation7 + $0xb8] sm:$0xff]
    %v1830 = vld [vmem:[#allocation7 + $0xc0] sm:$0xff]
    %v1831 = vld [vmem:[#allocation7 + $0xc8] sm:$0xff]
    %v1832 = vld [vmem:[#allocation7 + $0xd0] sm:$0xff]
    %v1833 = vld [vmem:[#allocation7 + $0xd8] sm:$0xff]
    %v1834 = vld [vmem:[#allocation7 + $0xe0] sm:$0xff]
    %v1835 = vld [vmem:[#allocation7 + $0xe8] sm:$0xff]
    %v1836 = vld [vmem:[#allocation7 + $0xf0] sm:$0xff]
    %v1837 = vld [vmem:[#allocation7 + $0xf8] sm:$0xff]
    %v1838 = vld [vmem:[#allocation7 + $0x100] sm:$0xff]
    %v1839 = vld [vmem:[#allocation7 + $0x108] sm:$0xff]
    %v1840 = vld [vmem:[#allocation7 + $0x110] sm:$0xff]
    %v1841 = vld [vmem:[#allocation7 + $0x118] sm:$0xff]
    %v1842 = vld [vmem:[#allocation7 + $0x120] sm:$0xff]
    %v1843 = vld [vmem:[#allocation7 + $0x128] sm:$0xff]
    %v1844 = vld [vmem:[#allocation7 + $0x130] sm:$0xff]
    %v1845 = vld [vmem:[#allocation7 + $0x138] sm:$0xff]
    %v1846 = vld [vmem:[#allocation7 + $0x140] sm:$0xff]
    %v1847 = vld [vmem:[#allocation7 + $0x148] sm:$0xff]
    %v1848 = vld [vmem:[#allocation7 + $0x150] sm:$0xff]
    %v1849 = vld [vmem:[#allocation7 + $0x158] sm:$0xff]
    %v1850 = vld [vmem:[#allocation7 + $0x160] sm:$0xff]
    %v1851 = vld [vmem:[#allocation7 + $0x168] sm:$0xff]
    %v1852 = vld [vmem:[#allocation7 + $0x170] sm:$0xff]
    %v1853 = vld [vmem:[#allocation7 + $0x178] sm:$0xff]
    %v1854 = vld [vmem:[#allocation7 + $0x180] sm:$0xff]
    %v1855 = vld [vmem:[#allocation7 + $0x188] sm:$0xff]
    %v1856 = vld [vmem:[#allocation7 + $0x190] sm:$0xff]
    %v1857 = vld [vmem:[#allocation7 + $0x198] sm:$0xff]
    %v1858 = vld [vmem:[#allocation7 + $0x1a0] sm:$0xff]
    %v1859 = vld [vmem:[#allocation7 + $0x1a8] sm:$0xff]
    %v1860 = vld [vmem:[#allocation7 + $0x1b0] sm:$0xff]
    %v1861 = vld [vmem:[#allocation7 + $0x1b8] sm:$0xff]
    %v1862 = vld [vmem:[#allocation7 + $0x1c0] sm:$0xff]
    %v1863 = vld [vmem:[#allocation7 + $0x1c8] sm:$0xff]
    %v1864 = vld [vmem:[#allocation7 + $0x1d0] sm:$0xff]
    %v1865 = vld [vmem:[#allocation7 + $0x1d8] sm:$0xff]
    %v1866 = vld [vmem:[#allocation7 + $0x1e0] sm:$0xff]
    %v1867 = vld [vmem:[#allocation7 + $0x1e8] sm:$0xff]
    %v1868 = vld [vmem:[#allocation7 + $0x1f0] sm:$0xff]
    %v1869 = vld [vmem:[#allocation7 + $0x1f8] sm:$0xff]
    %1870 = vmatprep.subr.mxu0 %v1807
    %1871 = vmatpush1.msra.mxu0 %v1806
    %1872 = vmatprep.subr.mxu0 %v1811
    %1873 = vmatpush1.msra.mxu0 %v1810
    %1874 = vmatprep.subr.mxu0 %v1815
    %1875 = vmatpush1.msra.mxu0 %v1814
    %1876 = vmatprep.subr.mxu0 %v1819
    %1877 = vmatpush1.msra.mxu0 %v1818
    %1878 = vmatprep.subr.mxu0 %v1823
    %1879 = vmatpush1.msra.mxu0 %v1822
    %1880 = vmatprep.subr.mxu0 %v1827
    %1881 = vmatpush1.msra.mxu0 %v1826
    %1882 = vmatprep.subr.mxu0 %v1831
    %1883 = vmatpush1.msra.mxu0 %v1830
    %1884 = vmatprep.subr.mxu0 %v1835
    %1885 = vmatpush1.msra.mxu0 %v1834
    %1886 = vmatprep.subr.mxu0 %v1839
    %1887 = vmatpush1.msra.mxu0 %v1838
    %1888 = vmatprep.subr.mxu0 %v1843
    %1889 = vmatpush1.msra.mxu0 %v1842
    %1890 = vmatprep.subr.mxu0 %v1847
    %1891 = vmatpush1.msra.mxu0 %v1846
    %1892 = vmatprep.subr.mxu0 %v1851
    %1893 = vmatpush1.msra.mxu0 %v1850
    %1894 = vmatprep.subr.mxu0 %v1855
    %1895 = vmatpush1.msra.mxu0 %v1854
    %1896 = vmatprep.subr.mxu0 %v1859
    %1897 = vmatpush1.msra.mxu0 %v1858
    %1898 = vmatprep.subr.mxu0 %v1863
    %1899 = vmatpush1.msra.mxu0 %v1862
    %1900 = vmatprep.subr.mxu0 %v1867
    %1901 = vmatpush1.msra.mxu0 %v1866
    %1902 = vmatprep.subr.mxu0 0.0
    %1903 = vmatpush1.msra.mxu0 0.0
    %1904 = vmatprep.subr.mxu0 0.0
    %1905 = vmatpush1.msra.mxu0 0.0
    %1906 = vmatprep.subr.mxu0 0.0
    %1907 = vmatpush1.msra.mxu0 0.0
    %1908 = vmatprep.subr.mxu0 0.0
    %1909 = vmatpush1.msra.mxu0 0.0
    %1910 = vmatprep.subr.mxu0 0.0
    %1911 = vmatpush1.msra.mxu0 0.0
    %1912 = vmatprep.subr.mxu0 0.0
    %1913 = vmatpush1.msra.mxu0 0.0
    %1914 = vmatprep.subr.mxu0 0.0
    %1915 = vmatpush1.msra.mxu0 0.0
    %1916 = vmatprep.subr.mxu0 0.0
    %1917 = vmatpush1.msra.mxu0 0.0
    %1918 = vmatprep.subr.mxu0 0.0
    %1919 = vmatpush1.msra.mxu0 0.0
    %1920 = vmatprep.subr.mxu0 0.0
    %1921 = vmatpush1.msra.mxu0 0.0
    %1922 = vmatprep.subr.mxu0 0.0
    %1923 = vmatpush1.msra.mxu0 0.0
    %1924 = vmatprep.subr.mxu0 0.0
    %1925 = vmatpush1.msra.mxu0 0.0
    %1926 = vmatprep.subr.mxu0 0.0
    %1927 = vmatpush1.msra.mxu0 0.0
    %1928 = vmatprep.subr.mxu0 0.0
    %1929 = vmatpush1.msra.mxu0 0.0
    %1930 = vmatprep.subr.mxu0 0.0
    %1931 = vmatpush1.msra.mxu0 0.0
    %1932 = vmatprep.subr.mxu0 0.0
    %1933 = vmatpush1.msra.mxu0 0.0
    %1934 = vmatprep.mubr.f32.mxu0 0.0
    %1935 = vmatmul.mubr.f32.gmra.mrb[0].mxu0 %v1802
    %v1936 = vpop.f32.mrb[0].mxu0
    %v1937 = vadd.f32 0.0, %v1936
    %v1938 = vpop.f32.mrb[0].mxu0
    %v1939 = vadd.f32 0.0, %v1938
    %1940 = vdwg.mxu0
    %1941 = vmatprep.subr.mxu0 %v1809
    %1942 = vmatpush1.msra.mxu0 %v1808
    %1943 = vmatprep.subr.mxu0 %v1813
    %1944 = vmatpush1.msra.mxu0 %v1812
    %1945 = vmatprep.subr.mxu0 %v1817
    %1946 = vmatpush1.msra.mxu0 %v1816
    %1947 = vmatprep.subr.mxu0 %v1821
    %1948 = vmatpush1.msra.mxu0 %v1820
    %1949 = vmatprep.subr.mxu0 %v1825
    %1950 = vmatpush1.msra.mxu0 %v1824
    %1951 = vmatprep.subr.mxu0 %v1829
    %1952 = vmatpush1.msra.mxu0 %v1828
    %1953 = vmatprep.subr.mxu0 %v1833
    %1954 = vmatpush1.msra.mxu0 %v1832
    %1955 = vmatprep.subr.mxu0 %v1837
    %1956 = vmatpush1.msra.mxu0 %v1836
    %1957 = vmatprep.subr.mxu0 %v1841
    %1958 = vmatpush1.msra.mxu0 %v1840
    %1959 = vmatprep.subr.mxu0 %v1845
    %1960 = vmatpush1.msra.mxu0 %v1844
    %1961 = vmatprep.subr.mxu0 %v1849
    %1962 = vmatpush1.msra.mxu0 %v1848
    %1963 = vmatprep.subr.mxu0 %v1853
    %1964 = vmatpush1.msra.mxu0 %v1852
    %1965 = vmatprep.subr.mxu0 %v1857
    %1966 = vmatpush1.msra.mxu0 %v1856
    %1967 = vmatprep.subr.mxu0 %v1861
    %1968 = vmatpush1.msra.mxu0 %v1860
    %1969 = vmatprep.subr.mxu0 %v1865
    %1970 = vmatpush1.msra.mxu0 %v1864
    %1971 = vmatprep.subr.mxu0 %v1869
    %1972 = vmatpush1.msra.mxu0 %v1868
    %1973 = vmatprep.subr.mxu0 0.0
    %1974 = vmatpush1.msra.mxu0 0.0
    %1975 = vmatprep.subr.mxu0 0.0
    %1976 = vmatpush1.msra.mxu0 0.0
    %1977 = vmatprep.subr.mxu0 0.0
    %1978 = vmatpush1.msra.mxu0 0.0
    %1979 = vmatprep.subr.mxu0 0.0
    %1980 = vmatpush1.msra.mxu0 0.0
    %1981 = vmatprep.subr.mxu0 0.0
    %1982 = vmatpush1.msra.mxu0 0.0
    %1983 = vmatprep.subr.mxu0 0.0
    %1984 = vmatpush1.msra.mxu0 0.0
    %1985 = vmatprep.subr.mxu0 0.0
    %1986 = vmatpush1.msra.mxu0 0.0
    %1987 = vmatprep.subr.mxu0 0.0
    %1988 = vmatpush1.msra.mxu0 0.0
    %1989 = vmatprep.subr.mxu0 0.0
    %1990 = vmatpush1.msra.mxu0 0.0
    %1991 = vmatprep.subr.mxu0 0.0
    %1992 = vmatpush1.msra.mxu0 0.0
    %1993 = vmatprep.subr.mxu0 0.0
    %1994 = vmatpush1.msra.mxu0 0.0
    %1995 = vmatprep.subr.mxu0 0.0
    %1996 = vmatpush1.msra.mxu0 0.0
    %1997 = vmatprep.subr.mxu0 0.0
    %1998 = vmatpush1.msra.mxu0 0.0
    %1999 = vmatprep.subr.mxu0 0.0
    %2000 = vmatpush1.msra.mxu0 0.0
    %2001 = vmatprep.subr.mxu0 0.0
    %2002 = vmatpush1.msra.mxu0 0.0
    %2003 = vmatprep.subr.mxu0 0.0
    %2004 = vmatpush1.msra.mxu0 0.0
    %2005 = vmatprep.mubr.f32.mxu0 0.0
    %2006 = vmatmul.mubr.f32.gmra.mrb[0].mxu0 %v1802
    %v2007 = vpop.f32.mrb[0].mxu0
    %v2008 = vadd.f32 0.0, %v2007
    %v2009 = vpop.f32.mrb[0].mxu0
    %v2010 = vadd.f32 0.0, %v2009
    %2011 = vdwg.mxu0
    %v2016 = vcombine.low %v1937, %v1939
    %v2017 = vcombine.low %v2008, %v2010
    %v2019 = vunpack.c.l.s4 1966171168
    %v2020 = vunpack.c.0.s8 %v2019
    %v2021 = vlaneseq
    %v2022 = vshrl.u32 %v2021, 7
    %v2023 = vsub.s32 %v2020, %v2022
    %v2024 = vrot.slane %v2016, %v2023
    %v2026 = vunpack.c.l.s4 1966171168
    %v2027 = vunpack.c.0.s8 %v2026
    %v2028 = vlaneseq
    %v2029 = vshrl.u32 %v2028, 7
    %v2030 = vsub.s32 %v2027, %v2029
    %v2031 = vrot.slane %v2017, %v2030
    %v2032 = vcombine.low %v2024, %v2031
    %v2034 = vunpack.c.l.s4 1966171168
    %v2035 = vunpack.c.0.s8 %v2034
    %v2036 = vlaneseq
    %v2037 = vshrl.u32 %v2036, 7
    %v2038 = vsub.s32 %v2035, %v2037
    %v2039 = vrot.slane %v2032, %v2038
    %v2041 = vadd.f32 %v1805, %v2039
    %v2042 = vxor.u32 %v2041, 2147483648
    %v2043 = vmul.f32 %v2042, 1.442695
    %v2044 = vpow.pop %v2043
    %v2045 = vadd.f32 %v2044, 1.0
    %v2046 = vrcp.pop %v2045
    %v2047 = vmul.f32 1.0, %v2046
    %v2049 = vrot.slane %v2041, 3
    %v2051 = vtanh.pop %v2049
    %v2053 = vrot.slane %v2047, 1
    %v2055 = vmul.f32 %v2053, %v1798
    %v2056 = vmul.f32 %v2047, %v2051
    %v2057 = vadd.f32 %v2055, %v2056
    %v2058 = vtanh.pop %v2057
    %v2059 = vrot.slane %v2047, 2
    %v2061 = vmul.f32 %v2059, %v2058
    %2062 = vst [vmem:[#allocation3 + $0x6] sm:$0x1] %v2061
    %s2063 = scalar_lea.vmem [#allocation2], 7
    %v2064 = vld [vmem:[%s2063] ss:$8 sm:$0xf]
    %v2065 = vld [vmem:[#allocation7] sm:$0xff]
    %v2066 = vld [vmem:[#allocation7 + $0x8] sm:$0xff]
    %v2067 = vld [vmem:[#allocation7 + $0x10] sm:$0xff]
    %v2068 = vld [vmem:[#allocation7 + $0x18] sm:$0xff]
    %v2069 = vld [vmem:[#allocation7 + $0x20] sm:$0xff]
    %v2070 = vld [vmem:[#allocation7 + $0x28] sm:$0xff]
    %v2071 = vld [vmem:[#allocation7 + $0x30] sm:$0xff]
    %v2072 = vld [vmem:[#allocation7 + $0x38] sm:$0xff]
    %v2073 = vld [vmem:[#allocation7 + $0x40] sm:$0xff]
    %v2074 = vld [vmem:[#allocation7 + $0x48] sm:$0xff]
    %v2075 = vld [vmem:[#allocation7 + $0x50] sm:$0xff]
    %v2076 = vld [vmem:[#allocation7 + $0x58] sm:$0xff]
    %v2077 = vld [vmem:[#allocation7 + $0x60] sm:$0xff]
    %v2078 = vld [vmem:[#allocation7 + $0x68] sm:$0xff]
    %v2079 = vld [vmem:[#allocation7 + $0x70] sm:$0xff]
    %v2080 = vld [vmem:[#allocation7 + $0x78] sm:$0xff]
    %v2081 = vld [vmem:[#allocation7 + $0x80] sm:$0xff]
    %v2082 = vld [vmem:[#allocation7 + $0x88] sm:$0xff]
    %v2083 = vld [vmem:[#allocation7 + $0x90] sm:$0xff]
    %v2084 = vld [vmem:[#allocation7 + $0x98] sm:$0xff]
    %v2085 = vld [vmem:[#allocation7 + $0xa0] sm:$0xff]
    %v2086 = vld [vmem:[#allocation7 + $0xa8] sm:$0xff]
    %v2087 = vld [vmem:[#allocation7 + $0xb0] sm:$0xff]
    %v2088 = vld [vmem:[#allocation7 + $0xb8] sm:$0xff]
    %v2089 = vld [vmem:[#allocation7 + $0xc0] sm:$0xff]
    %v2090 = vld [vmem:[#allocation7 + $0xc8] sm:$0xff]
    %v2091 = vld [vmem:[#allocation7 + $0xd0] sm:$0xff]
    %v2092 = vld [vmem:[#allocation7 + $0xd8] sm:$0xff]
    %v2093 = vld [vmem:[#allocation7 + $0xe0] sm:$0xff]
    %v2094 = vld [vmem:[#allocation7 + $0xe8] sm:$0xff]
    %v2095 = vld [vmem:[#allocation7 + $0xf0] sm:$0xff]
    %v2096 = vld [vmem:[#allocation7 + $0xf8] sm:$0xff]
    %v2097 = vld [vmem:[#allocation7 + $0x100] sm:$0xff]
    %v2098 = vld [vmem:[#allocation7 + $0x108] sm:$0xff]
    %v2099 = vld [vmem:[#allocation7 + $0x110] sm:$0xff]
    %v2100 = vld [vmem:[#allocation7 + $0x118] sm:$0xff]
    %v2101 = vld [vmem:[#allocation7 + $0x120] sm:$0xff]
    %v2102 = vld [vmem:[#allocation7 + $0x128] sm:$0xff]
    %v2103 = vld [vmem:[#allocation7 + $0x130] sm:$0xff]
    %v2104 = vld [vmem:[#allocation7 + $0x138] sm:$0xff]
    %v2105 = vld [vmem:[#allocation7 + $0x140] sm:$0xff]
    %v2106 = vld [vmem:[#allocation7 + $0x148] sm:$0xff]
    %v2107 = vld [vmem:[#allocation7 + $0x150] sm:$0xff]
    %v2108 = vld [vmem:[#allocation7 + $0x158] sm:$0xff]
    %v2109 = vld [vmem:[#allocation7 + $0x160] sm:$0xff]
    %v2110 = vld [vmem:[#allocation7 + $0x168] sm:$0xff]
    %v2111 = vld [vmem:[#allocation7 + $0x170] sm:$0xff]
    %v2112 = vld [vmem:[#allocation7 + $0x178] sm:$0xff]
    %v2113 = vld [vmem:[#allocation7 + $0x180] sm:$0xff]
    %v2114 = vld [vmem:[#allocation7 + $0x188] sm:$0xff]
    %v2115 = vld [vmem:[#allocation7 + $0x190] sm:$0xff]
    %v2116 = vld [vmem:[#allocation7 + $0x198] sm:$0xff]
    %v2117 = vld [vmem:[#allocation7 + $0x1a0] sm:$0xff]
    %v2118 = vld [vmem:[#allocation7 + $0x1a8] sm:$0xff]
    %v2119 = vld [vmem:[#allocation7 + $0x1b0] sm:$0xff]
    %v2120 = vld [vmem:[#allocation7 + $0x1b8] sm:$0xff]
    %v2121 = vld [vmem:[#allocation7 + $0x1c0] sm:$0xff]
    %v2122 = vld [vmem:[#allocation7 + $0x1c8] sm:$0xff]
    %v2123 = vld [vmem:[#allocation7 + $0x1d0] sm:$0xff]
    %v2124 = vld [vmem:[#allocation7 + $0x1d8] sm:$0xff]
    %v2125 = vld [vmem:[#allocation7 + $0x1e0] sm:$0xff]
    %v2126 = vld [vmem:[#allocation7 + $0x1e8] sm:$0xff]
    %v2127 = vld [vmem:[#allocation7 + $0x1f0] sm:$0xff]
    %v2128 = vld [vmem:[#allocation7 + $0x1f8] sm:$0xff]
    %2129 = vmatprep.subr.mxu0 %v2066
    %2130 = vmatpush1.msra.mxu0 %v2065
    %2131 = vmatprep.subr.mxu0 %v2070
    %2132 = vmatpush1.msra.mxu0 %v2069
    %2133 = vmatprep.subr.mxu0 %v2074
    %2134 = vmatpush1.msra.mxu0 %v2073
    %2135 = vmatprep.subr.mxu0 %v2078
    %2136 = vmatpush1.msra.mxu0 %v2077
    %2137 = vmatprep.subr.mxu0 %v2082
    %2138 = vmatpush1.msra.mxu0 %v2081
    %2139 = vmatprep.subr.mxu0 %v2086
    %2140 = vmatpush1.msra.mxu0 %v2085
    %2141 = vmatprep.subr.mxu0 %v2090
    %2142 = vmatpush1.msra.mxu0 %v2089
    %2143 = vmatprep.subr.mxu0 %v2094
    %2144 = vmatpush1.msra.mxu0 %v2093
    %2145 = vmatprep.subr.mxu0 %v2098
    %2146 = vmatpush1.msra.mxu0 %v2097
    %2147 = vmatprep.subr.mxu0 %v2102
    %2148 = vmatpush1.msra.mxu0 %v2101
    %2149 = vmatprep.subr.mxu0 %v2106
    %2150 = vmatpush1.msra.mxu0 %v2105
    %2151 = vmatprep.subr.mxu0 %v2110
    %2152 = vmatpush1.msra.mxu0 %v2109
    %2153 = vmatprep.subr.mxu0 %v2114
    %2154 = vmatpush1.msra.mxu0 %v2113
    %2155 = vmatprep.subr.mxu0 %v2118
    %2156 = vmatpush1.msra.mxu0 %v2117
    %2157 = vmatprep.subr.mxu0 %v2122
    %2158 = vmatpush1.msra.mxu0 %v2121
    %2159 = vmatprep.subr.mxu0 %v2126
    %2160 = vmatpush1.msra.mxu0 %v2125
    %2161 = vmatprep.subr.mxu0 0.0
    %2162 = vmatpush1.msra.mxu0 0.0
    %2163 = vmatprep.subr.mxu0 0.0
    %2164 = vmatpush1.msra.mxu0 0.0
    %2165 = vmatprep.subr.mxu0 0.0
    %2166 = vmatpush1.msra.mxu0 0.0
    %2167 = vmatprep.subr.mxu0 0.0
    %2168 = vmatpush1.msra.mxu0 0.0
    %2169 = vmatprep.subr.mxu0 0.0
    %2170 = vmatpush1.msra.mxu0 0.0
    %2171 = vmatprep.subr.mxu0 0.0
    %2172 = vmatpush1.msra.mxu0 0.0
    %2173 = vmatprep.subr.mxu0 0.0
    %2174 = vmatpush1.msra.mxu0 0.0
    %2175 = vmatprep.subr.mxu0 0.0
    %2176 = vmatpush1.msra.mxu0 0.0
    %2177 = vmatprep.subr.mxu0 0.0
    %2178 = vmatpush1.msra.mxu0 0.0
    %2179 = vmatprep.subr.mxu0 0.0
    %2180 = vmatpush1.msra.mxu0 0.0
    %2181 = vmatprep.subr.mxu0 0.0
    %2182 = vmatpush1.msra.mxu0 0.0
    %2183 = vmatprep.subr.mxu0 0.0
    %2184 = vmatpush1.msra.mxu0 0.0
    %2185 = vmatprep.subr.mxu0 0.0
    %2186 = vmatpush1.msra.mxu0 0.0
    %2187 = vmatprep.subr.mxu0 0.0
    %2188 = vmatpush1.msra.mxu0 0.0
    %2189 = vmatprep.subr.mxu0 0.0
    %2190 = vmatpush1.msra.mxu0 0.0
    %2191 = vmatprep.subr.mxu0 0.0
    %2192 = vmatpush1.msra.mxu0 0.0
    %2193 = vmatprep.mubr.f32.mxu0 0.0
    %2194 = vmatmul.mubr.f32.gmra.mrb[0].mxu0 %v2061
    %v2195 = vpop.f32.mrb[0].mxu0
    %v2196 = vadd.f32 0.0, %v2195
    %v2197 = vpop.f32.mrb[0].mxu0
    %v2198 = vadd.f32 0.0, %v2197
    %2199 = vdwg.mxu0
    %2200 = vmatprep.subr.mxu0 %v2068
    %2201 = vmatpush1.msra.mxu0 %v2067
    %2202 = vmatprep.subr.mxu0 %v2072
    %2203 = vmatpush1.msra.mxu0 %v2071
    %2204 = vmatprep.subr.mxu0 %v2076
    %2205 = vmatpush1.msra.mxu0 %v2075
    %2206 = vmatprep.subr.mxu0 %v2080
    %2207 = vmatpush1.msra.mxu0 %v2079
    %2208 = vmatprep.subr.mxu0 %v2084
    %2209 = vmatpush1.msra.mxu0 %v2083
    %2210 = vmatprep.subr.mxu0 %v2088
    %2211 = vmatpush1.msra.mxu0 %v2087
    %2212 = vmatprep.subr.mxu0 %v2092
    %2213 = vmatpush1.msra.mxu0 %v2091
    %2214 = vmatprep.subr.mxu0 %v2096
    %2215 = vmatpush1.msra.mxu0 %v2095
    %2216 = vmatprep.subr.mxu0 %v2100
    %2217 = vmatpush1.msra.mxu0 %v2099
    %2218 = vmatprep.subr.mxu0 %v2104
    %2219 = vmatpush1.msra.mxu0 %v2103
    %2220 = vmatprep.subr.mxu0 %v2108
    %2221 = vmatpush1.msra.mxu0 %v2107
    %2222 = vmatprep.subr.mxu0 %v2112
    %2223 = vmatpush1.msra.mxu0 %v2111
    %2224 = vmatprep.subr.mxu0 %v2116
    %2225 = vmatpush1.msra.mxu0 %v2115
    %2226 = vmatprep.subr.mxu0 %v2120
    %2227 = vmatpush1.msra.mxu0 %v2119
    %2228 = vmatprep.subr.mxu0 %v2124
    %2229 = vmatpush1.msra.mxu0 %v2123
    %2230 = vmatprep.subr.mxu0 %v2128
    %2231 = vmatpush1.msra.mxu0 %v2127
    %2232 = vmatprep.subr.mxu0 0.0
    %2233 = vmatpush1.msra.mxu0 0.0
    %2234 = vmatprep.subr.mxu0 0.0
    %2235 = vmatpush1.msra.mxu0 0.0
    %2236 = vmatprep.subr.mxu0 0.0
    %2237 = vmatpush1.msra.mxu0 0.0
    %2238 = vmatprep.subr.mxu0 0.0
    %2239 = vmatpush1.msra.mxu0 0.0
    %2240 = vmatprep.subr.mxu0 0.0
    %2241 = vmatpush1.msra.mxu0 0.0
    %2242 = vmatprep.subr.mxu0 0.0
    %2243 = vmatpush1.msra.mxu0 0.0
    %2244 = vmatprep.subr.mxu0 0.0
    %2245 = vmatpush1.msra.mxu0 0.0
    %2246 = vmatprep.subr.mxu0 0.0
    %2247 = vmatpush1.msra.mxu0 0.0
    %2248 = vmatprep.subr.mxu0 0.0
    %2249 = vmatpush1.msra.mxu0 0.0
    %2250 = vmatprep.subr.mxu0 0.0
    %2251 = vmatpush1.msra.mxu0 0.0
    %2252 = vmatprep.subr.mxu0 0.0
    %2253 = vmatpush1.msra.mxu0 0.0
    %2254 = vmatprep.subr.mxu0 0.0
    %2255 = vmatpush1.msra.mxu0 0.0
    %2256 = vmatprep.subr.mxu0 0.0
    %2257 = vmatpush1.msra.mxu0 0.0
    %2258 = vmatprep.subr.mxu0 0.0
    %2259 = vmatpush1.msra.mxu0 0.0
    %2260 = vmatprep.subr.mxu0 0.0
    %2261 = vmatpush1.msra.mxu0 0.0
    %2262 = vmatprep.subr.mxu0 0.0
    %2263 = vmatpush1.msra.mxu0 0.0
    %2264 = vmatprep.mubr.f32.mxu0 0.0
    %2265 = vmatmul.mubr.f32.gmra.mrb[0].mxu0 %v2061
    %v2266 = vpop.f32.mrb[0].mxu0
    %v2267 = vadd.f32 0.0, %v2266
    %v2268 = vpop.f32.mrb[0].mxu0
    %v2269 = vadd.f32 0.0, %v2268
    %2270 = vdwg.mxu0
    %v2275 = vcombine.low %v2196, %v2198
    %v2276 = vcombine.low %v2267, %v2269
    %v2278 = vunpack.c.l.s4 1966171168
    %v2279 = vunpack.c.0.s8 %v2278
    %v2280 = vlaneseq
    %v2281 = vshrl.u32 %v2280, 7
    %v2282 = vsub.s32 %v2279, %v2281
    %v2283 = vrot.slane %v2275, %v2282
    %v2285 = vunpack.c.l.s4 1966171168
    %v2286 = vunpack.c.0.s8 %v2285
    %v2287 = vlaneseq
    %v2288 = vshrl.u32 %v2287, 7
    %v2289 = vsub.s32 %v2286, %v2288
    %v2290 = vrot.slane %v2276, %v2289
    %v2291 = vcombine.low %v2283, %v2290
    %v2293 = vunpack.c.l.s4 1966171168
    %v2294 = vunpack.c.0.s8 %v2293
    %v2295 = vlaneseq
    %v2296 = vshrl.u32 %v2295, 7
    %v2297 = vsub.s32 %v2294, %v2296
    %v2298 = vrot.slane %v2291, %v2297
    %v2300 = vadd.f32 %v2064, %v2298
    %v2301 = vxor.u32 %v2300, 2147483648
    %v2302 = vmul.f32 %v2301, 1.442695
    %v2303 = vpow.pop %v2302
    %v2304 = vadd.f32 %v2303, 1.0
    %v2305 = vrcp.pop %v2304
    %v2306 = vmul.f32 1.0, %v2305
    %v2308 = vrot.slane %v2300, 3
    %v2310 = vtanh.pop %v2308
    %v2312 = vrot.slane %v2306, 1
    %v2314 = vmul.f32 %v2312, %v2057
    %v2315 = vmul.f32 %v2306, %v2310
    %v2316 = vadd.f32 %v2314, %v2315
    %v2317 = vtanh.pop %v2316
    %v2318 = vrot.slane %v2306, 2
    %v2320 = vmul.f32 %v2318, %v2317
    %2321 = vst [vmem:[#allocation3 + $0x7] sm:$0x1] %v2320
    %v2322 = vld [vmem:[#allocation3] sm:$0xff]
    %v2323 = vld [vmem:[#allocation9] sm:$0xff]
    %v2324 = vld [vmem:[#allocation9 + $0x8] sm:$0xff]
    %v2325 = vld [vmem:[#allocation9 + $0x10] sm:$0xff]
    %v2326 = vld [vmem:[#allocation9 + $0x18] sm:$0xff]
    %v2327 = vld [vmem:[#allocation9 + $0x20] sm:$0xff]
    %v2328 = vld [vmem:[#allocation9 + $0x28] sm:$0xff]
    %v2329 = vld [vmem:[#allocation9 + $0x30] sm:$0xff]
    %v2330 = vld [vmem:[#allocation9 + $0x38] sm:$0xff]
    %v2331 = vld [vmem:[#allocation9 + $0x40] sm:$0xff]
    %v2332 = vld [vmem:[#allocation9 + $0x48] sm:$0xff]
    %v2333 = vld [vmem:[#allocation9 + $0x50] sm:$0xff]
    %v2334 = vld [vmem:[#allocation9 + $0x58] sm:$0xff]
    %v2335 = vld [vmem:[#allocation9 + $0x60] sm:$0xff]
    %v2336 = vld [vmem:[#allocation9 + $0x68] sm:$0xff]
    %v2337 = vld [vmem:[#allocation9 + $0x70] sm:$0xff]
    %v2338 = vld [vmem:[#allocation9 + $0x78] sm:$0xff]
    %v2339 = vld [vmem:[%s5] sm:$0x1]
    %v2341 = vlaneseq
    %v2342 = vshrl.u32 %v2341, 7
    %v2343 = vsub.s32 0, %v2342
    %v2344 = vrot.slane %v2339, %v2343
    %2346 = vmatprep.subr.mxu0 0.0
    %2347 = vmatpush1.msra.mxu0 %v2323
    %2348 = vmatprep.subr.mxu0 0.0
    %2349 = vmatpush1.msra.mxu0 %v2324
    %2350 = vmatprep.subr.mxu0 0.0
    %2351 = vmatpush1.msra.mxu0 %v2325
    %2352 = vmatprep.subr.mxu0 0.0
    %2353 = vmatpush1.msra.mxu0 %v2326
    %2354 = vmatprep.subr.mxu0 0.0
    %2355 = vmatpush1.msra.mxu0 %v2327
    %2356 = vmatprep.subr.mxu0 0.0
    %2357 = vmatpush1.msra.mxu0 %v2328
    %2358 = vmatprep.subr.mxu0 0.0
    %2359 = vmatpush1.msra.mxu0 %v2329
    %2360 = vmatprep.subr.mxu0 0.0
    %2361 = vmatpush1.msra.mxu0 %v2330
    %2362 = vmatprep.subr.mxu0 0.0
    %2363 = vmatpush1.msra.mxu0 %v2331
    %2364 = vmatprep.subr.mxu0 0.0
    %2365 = vmatpush1.msra.mxu0 %v2332
    %2366 = vmatprep.subr.mxu0 0.0
    %2367 = vmatpush1.msra.mxu0 %v2333
    %2368 = vmatprep.subr.mxu0 0.0
    %2369 = vmatpush1.msra.mxu0 %v2334
    %2370 = vmatprep.subr.mxu0 0.0
    %2371 = vmatpush1.msra.mxu0 %v2335
    %2372 = vmatprep.subr.mxu0 0.0
    %2373 = vmatpush1.msra.mxu0 %v2336
    %2374 = vmatprep.subr.mxu0 0.0
    %2375 = vmatpush1.msra.mxu0 %v2337
    %2376 = vmatprep.subr.mxu0 0.0
    %2377 = vmatpush1.msra.mxu0 %v2338
    %2378 = vmatprep.subr.mxu0 0.0
    %2379 = vmatpush1.msra.mxu0 0.0
    %2380 = vmatprep.subr.mxu0 0.0
    %2381 = vmatpush1.msra.mxu0 0.0
    %2382 = vmatprep.subr.mxu0 0.0
    %2383 = vmatpush1.msra.mxu0 0.0
    %2384 = vmatprep.subr.mxu0 0.0
    %2385 = vmatpush1.msra.mxu0 0.0
    %2386 = vmatprep.subr.mxu0 0.0
    %2387 = vmatpush1.msra.mxu0 0.0
    %2388 = vmatprep.subr.mxu0 0.0
    %2389 = vmatpush1.msra.mxu0 0.0
    %2390 = vmatprep.subr.mxu0 0.0
    %2391 = vmatpush1.msra.mxu0 0.0
    %2392 = vmatprep.subr.mxu0 0.0
    %2393 = vmatpush1.msra.mxu0 0.0
    %2394 = vmatprep.subr.mxu0 0.0
    %2395 = vmatpush1.msra.mxu0 0.0
    %2396 = vmatprep.subr.mxu0 0.0
    %2397 = vmatpush1.msra.mxu0 0.0
    %2398 = vmatprep.subr.mxu0 0.0
    %2399 = vmatpush1.msra.mxu0 0.0
    %2400 = vmatprep.subr.mxu0 0.0
    %2401 = vmatpush1.msra.mxu0 0.0
    %2402 = vmatprep.subr.mxu0 0.0
    %2403 = vmatpush1.msra.mxu0 0.0
    %2404 = vmatprep.subr.mxu0 0.0
    %2405 = vmatpush1.msra.mxu0 0.0
    %2406 = vmatprep.subr.mxu0 0.0
    %2407 = vmatpush1.msra.mxu0 0.0
    %2408 = vmatprep.subr.mxu0 0.0
    %2409 = vmatpush1.msra.mxu0 0.0
    %2410 = vmatprep.mubr.f32.mxu0 0.0
    %2411 = vmatmul.mubr.f32.gmra.mrb[0].mxu0 %v2322
    %v2412 = vpop.f32.mrb[0].mxu0
    %v2413 = vadd.f32 %v2344, %v2412
    %v2414 = vpop.f32.mrb[0].mxu0
    %2415 = vdwg.mxu0
    %v2416 = vtanh.pop %v2413
    %2417 = vst [vmem:[#allocation10] sm:$0xff] %v2416
    // Predicated region
    $region38: #{tpu_custom_call.1} parent=1 // pred_check
      _
    $region39: #{tpu_custom_call.1} parent=1 // pred_check_branch
      %2419 = sbr.rel (0) target = $region41
    $region40: #{tpu_custom_call.1} parent=1 // pred_region
      %s2421 = ssub.s32 128, 128
      %2422 = vsyncadd [#allocation6], %s2421
      %s2424 = sshll.u32 [#allocation10], 4
      %s2425 = int_to_ptr.vmem [resolvable:$true] %s2424
      %2427 = dma.vmem_to_hbm [thread:$0]  %s2425, 128, %s6, [#allocation6]
    $region41: #{tpu_custom_call.1} parent=1 // pred_fallthru
      _
    // Predicated region
    $region42: #{tpu_custom_call.1} parent=1 // pred_check
      _
    $region43: #{tpu_custom_call.1} parent=1 // pred_check_branch
      %2429 = sbr.rel (0) target = $region45
    $region44: #{tpu_custom_call.1} parent=1 // pred_region
      %2430 = dma.done [#allocation6], 128
    $region45: #{tpu_custom_call.1} parent=1 // pred_fallthru
      _
    %2431 = vsyncpa [#allocation5], 1
    %2432 = vsyncpa [#allocation8], 1
    %2433 = vsyncpa [#allocation6], 1

</llo_original>
